<compile_context>
chip_gen: v5e
topology: v5e:2x2
jax: 0.10.0
libtpu: 0.0.40
codegen_flags: <defaults>
</compile_context>

<pallas_src>
import functools

import jax
import jax.numpy as jnp
from jax.experimental import pallas as pl
from jax.experimental.pallas import tpu as pltpu


# ----------------------------- Pallas kernel --------------------------------

def encoder_kernel(*refs, n_layers, L, B, H):
    """Fused multi-layer LSTM encoder.

    refs layout:
      [0]                     src_ref        (L, B, In)
      [1 + 3l .. 3 + 3l]      wih, whh, b    per layer l (pre-transposed,
                                              gate columns ordered i,f,o,g,
                                              b = b_ih + b_hh, shape (1,4H))
      [1 + 3n]                h_out          (n_layers, B, H)
      [2 + 3n]                c_out          (n_layers, B, H)
      [3 + 3n]                gx_sc  scratch (L, B, 4H)  batched input proj
      [4 + 3n]                seq_sc scratch (L, B, H)   layer output sequence
    """
    src_ref = refs[0]
    h_out = refs[1 + 3 * n_layers]
    c_out = refs[2 + 3 * n_layers]
    gx_sc = refs[3 + 3 * n_layers]
    seq_sc = refs[4 + 3 * n_layers]

    for l in range(n_layers):
        wih_ref, whh_ref, b_ref = refs[1 + 3 * l: 4 + 3 * l]

        # Input sequence for this layer (layer 0: src, else previous layer's
        # hidden sequence kept in VMEM scratch).
        x_seq = src_ref[...] if l == 0 else seq_sc[...]
        in_dim = x_seq.shape[-1]

        # Batched input projection for ALL timesteps (off the serial path),
        # bias broadcast hoisted out of the time loop.
        gx_sc[...] = (
            jnp.dot(x_seq.reshape(L * B, in_dim), wih_ref[...],
                    preferred_element_type=jnp.float32)
            + b_ref[...]
        ).reshape(L, B, 4 * H)

        whh = whh_ref[...]

        def step(t, carry, whh=whh, l=l):
            h, c = carry
            # Only one MXU dot on the recurrent critical path.
            gates = gx_sc[t] + jnp.dot(h, whh,
                                       preferred_element_type=jnp.float32)
            # Gate columns are pre-ordered (i, f, o | g): one sigmoid pass,
            # one tanh pass.
            sig = jax.nn.sigmoid(gates[:, :3 * H])
            g = jnp.tanh(gates[:, 3 * H:])
            i_g = sig[:, :H]
            f_g = sig[:, H:2 * H]
            o_g = sig[:, 2 * H:3 * H]
            c_new = f_g * c + i_g * g
            h_new = o_g * jnp.tanh(c_new)
            if l < n_layers - 1:
                seq_sc[t] = h_new        # feed the next layer
            return h_new, c_new

        zeros = jnp.zeros((B, H), jnp.float32)
        h_f, c_f = jax.lax.fori_loop(0, L, step, (zeros, zeros), unroll=True)

        h_out[l] = h_f
        c_out[l] = c_f


# ----------------------------- wrapper ---------------------------------------

def encoder_forward(src, kernel_layers, *, n_layers, H):
    """src: (L, B, In); kernel_layers: [(wih (In,4H), whh (H,4H), b (1,4H))]."""
    L, B, _ = src.shape

    operands = [src]
    vmem_spec = pl.BlockSpec(memory_space=pltpu.MemorySpace.VMEM)
    in_specs = [vmem_spec]
    for (wih, whh, b) in kernel_layers:
        operands += [wih, whh, b]
        in_specs += [vmem_spec, vmem_spec, vmem_spec]

    kern = functools.partial(encoder_kernel, n_layers=n_layers, L=L, B=B, H=H)

    return pl.pallas_call(
        kern,
        out_shape=(jax.ShapeDtypeStruct((n_layers, B, H), jnp.float32),
                   jax.ShapeDtypeStruct((n_layers, B, H), jnp.float32)),
        in_specs=in_specs,
        out_specs=(vmem_spec, vmem_spec),
        scratch_shapes=[pltpu.VMEM((L, B, 4 * H), jnp.float32),
                        pltpu.VMEM((L, B, H), jnp.float32)],
    )(*operands)


# --------------------- PyTorch-layout params & conversion --------------------

def convert_layer(Wih, Whh, bih, bhh, H):
    """PyTorch layout (4H,In),(4H,H),(4H,),(4H,) with gate order (i,f,g,o)
    -> kernel layout: pre-transposed, gate columns (i,f,o,g), combined bias."""
    perm = jnp.concatenate([jnp.arange(0, 2 * H),          # i, f
                            jnp.arange(3 * H, 4 * H),      # o
                            jnp.arange(2 * H, 3 * H)])     # g
    wih = Wih.T[:, perm]
    whh = Whh.T[:, perm]
    b = ((bih + bhh)[perm])[None, :]
    return wih, whh, b


# ----------------------------- reference (pure JAX) --------------------------

def encoder_ref(src, pt_layers, H):
    """Faithful nn.LSTM forward (PyTorch gate order i,f,g,o, zero init state)."""
    _, B, _ = src.shape
    x = src
    hs, cs = [], []
    for (Wih, Whh, bih, bhh) in pt_layers:
        wih_t, whh_t, b = Wih.T, Whh.T, bih + bhh

        def step(carry, xt, wih_t=wih_t, whh_t=whh_t, b=b):
            h, c = carry
            gates = (xt @ wih_t + b) + h @ whh_t
            i = jax.nn.sigmoid(gates[:, 0 * H:1 * H])
            f = jax.nn.sigmoid(gates[:, 1 * H:2 * H])
            g = jnp.tanh(gates[:, 2 * H:3 * H])
            o = jax.nn.sigmoid(gates[:, 3 * H:4 * H])
            c = f * c + i * g
            h = o * jnp.tanh(c)
            return (h, c), h

        init = (jnp.zeros((B, H), jnp.float32), jnp.zeros((B, H), jnp.float32))
        (h, c), ys = jax.lax.scan(step, init, x)
        hs.append(h)
        cs.append(c)
        x = ys  # TODO(synk): inter-layer dropout is identity in eval mode
    return jnp.stack(hs, 0), jnp.stack(cs, 0)


# ----------------------------- main ------------------------------------------

if __name__ == "__main__":
    INPUT_DIM = 32      # nn.LSTM input_size (feature dim of src)
    HID_DIM = 32
    N_LAYERS = 2
    SEQ_LEN = 8
    BATCH = 8

    key = jax.random.PRNGKey(0)
    key, ksrc = jax.random.split(key)
    src = jax.random.normal(ksrc, (SEQ_LEN, BATCH, INPUT_DIM), jnp.float32)

    s = 1.0 / (HID_DIM ** 0.5)   # PyTorch LSTM default init scale

    def u(k, shape):
        return jax.random.uniform(k, shape, jnp.float32, -s, s)

    # Parameters in native PyTorch nn.LSTM layout.
    pt_layers = []
    for l in range(N_LAYERS):
        in_dim = INPUT_DIM if l == 0 else HID_DIM
        key, k1, k2, k3, k4 = jax.random.split(key, 5)
        pt_layers.append((u(k1, (4 * HID_DIM, in_dim)),   # weight_ih_l{l}
                          u(k2, (4 * HID_DIM, HID_DIM)),  # weight_hh_l{l}
                          u(k3, (4 * HID_DIM,)),          # bias_ih_l{l}
                          u(k4, (4 * HID_DIM,))))         # bias_hh_l{l}

    kernel_layers = [convert_layer(*lw, H=HID_DIM) for lw in pt_layers]

    hidden, cell = jax.block_until_ready(
        encoder_forward(src, kernel_layers, n_layers=N_LAYERS, H=HID_DIM))
    h_ref, c_ref = jax.block_until_ready(encoder_ref(src, pt_layers, HID_DIM))

    assert hidden.shape == (N_LAYERS, BATCH, HID_DIM), hidden.shape
    assert cell.shape == (N_LAYERS, BATCH, HID_DIM), cell.shape
    err = max(float(jnp.max(jnp.abs(hidden - h_ref))),
              float(jnp.max(jnp.abs(cell - c_ref))))
    assert jnp.allclose(hidden, h_ref, atol=1e-4, rtol=1e-4), err
    assert jnp.allclose(cell, c_ref, atol=1e-4, rtol=1e-4), err
    print("KERNEL_OK")
</pallas_src>

<mosaic_0001>
module attributes {stable_mosaic.version = 11 : i64} {
  func.func @encoder_kernel(%arg0: memref<8x8x32xf32, #tpu.memory_space<vmem>>, %arg1: memref<32x128xf32, #tpu.memory_space<vmem>>, %arg2: memref<32x128xf32, #tpu.memory_space<vmem>>, %arg3: memref<1x128xf32, #tpu.memory_space<vmem>>, %arg4: memref<32x128xf32, #tpu.memory_space<vmem>>, %arg5: memref<32x128xf32, #tpu.memory_space<vmem>>, %arg6: memref<1x128xf32, #tpu.memory_space<vmem>>, %arg7: memref<2x8x32xf32, #tpu.memory_space<vmem>>, %arg8: memref<2x8x32xf32, #tpu.memory_space<vmem>>, %arg9: memref<8x8x128xf32, #tpu.memory_space<vmem>>, %arg10: memref<8x8x32xf32, #tpu.memory_space<vmem>>) attributes {dimension_semantics = [], scalar_prefetch = 0 : i64, scratch_operands = 2 : i64, tpu.core_type = #tpu.core_type<tc>} {
    %c0 = arith.constant 0 : index
    %c0_0 = arith.constant 0 : index
    %c0_1 = arith.constant 0 : index
    %0 = vector.load %arg0[%c0, %c0_0, %c0_1] : memref<8x8x32xf32, #tpu.memory_space<vmem>>, vector<8x8x32xf32>
    %1 = vector.shape_cast %0 : vector<8x8x32xf32> to vector<64x32xf32>
    %c0_2 = arith.constant 0 : index
    %c0_3 = arith.constant 0 : index
    %2 = vector.load %arg1[%c0_2, %c0_3] : memref<32x128xf32, #tpu.memory_space<vmem>>, vector<32x128xf32>
    %cst = arith.constant dense<0.000000e+00> : vector<64x128xf32>
    %3 = tpu.matmul %1, %2, %cst {dimension_numbers = #tpu.dot_dimension_numbers<[1], [0], [0], [1], [0, 0, 1, 1], [], []>} : vector<64x32xf32>, vector<32x128xf32>, vector<64x128xf32> -> vector<64x128xf32>
    %c0_4 = arith.constant 0 : index
    %c0_5 = arith.constant 0 : index
    %4 = vector.load %arg3[%c0_4, %c0_5] : memref<1x128xf32, #tpu.memory_space<vmem>>, vector<1x128xf32>
    %5 = vector.broadcast %4 : vector<1x128xf32> to vector<64x128xf32>
    %6 = arith.addf %3, %5 : vector<64x128xf32>
    %7 = vector.shape_cast %6 : vector<64x128xf32> to vector<8x8x128xf32>
    %c0_6 = arith.constant 0 : index
    %c0_7 = arith.constant 0 : index
    %c0_8 = arith.constant 0 : index
    %8 = vector.load %arg9[%c0_6, %c0_7, %c0_8] : memref<8x8x128xf32, #tpu.memory_space<vmem>>, vector<8x8x128xf32>
    tpu.vector_store %arg9[%c0_6, %c0_7, %c0_8], %7 {strides = array<i32>} : memref<8x8x128xf32, #tpu.memory_space<vmem>>, vector<8x8x128xf32>,
    %c0_9 = arith.constant 0 : index
    %c0_10 = arith.constant 0 : index
    %9 = vector.load %arg2[%c0_9, %c0_10] : memref<32x128xf32, #tpu.memory_space<vmem>>, vector<32x128xf32>
    %cst_11 = arith.constant 0.000000e+00 : f32
    %10 = vector.broadcast %cst_11 : f32 to vector<8x32xf32>
    %c0_i32 = arith.constant 0 : i32
    %11 = arith.index_cast %c0_i32 : i32 to index
    %c0_12 = arith.constant 0 : index
    %c0_13 = arith.constant 0 : index
    %12 = vector.load %arg9[%11, %c0_12, %c0_13] : memref<8x8x128xf32, #tpu.memory_space<vmem>>, vector<1x8x128xf32>
    %13 = vector.shape_cast %12 : vector<1x8x128xf32> to vector<8x128xf32>
    %cst_14 = arith.constant dense<0.000000e+00> : vector<8x128xf32>
    %14 = tpu.matmul %10, %9, %cst_14 {dimension_numbers = #tpu.dot_dimension_numbers<[1], [0], [0], [1], [0, 0, 1, 1], [], []>} : vector<8x32xf32>, vector<32x128xf32>, vector<8x128xf32> -> vector<8x128xf32>
    %15 = arith.addf %13, %14 : vector<8x128xf32>
    %16 = vector.extract_strided_slice %15 {offsets = [0, 0], sizes = [8, 96], strides = [1, 1]} : vector<8x128xf32> to vector<8x96xf32>
    %17 = arith.negf %16 : vector<8x96xf32>
    %18 = math.exp %17 : vector<8x96xf32>
    %cst_15 = arith.constant 1.000000e+00 : f32
    %19 = vector.broadcast %cst_15 : f32 to vector<8x96xf32>
    %20 = arith.addf %19, %18 : vector<8x96xf32>
    %21 = arith.divf %19, %20 : vector<8x96xf32>
    %22 = vector.extract_strided_slice %15 {offsets = [0, 96], sizes = [8, 32], strides = [1, 1]} : vector<8x128xf32> to vector<8x32xf32>
    %23 = math.tanh %22 : vector<8x32xf32>
    %24 = vector.extract_strided_slice %21 {offsets = [0, 0], sizes = [8, 32], strides = [1, 1]} : vector<8x96xf32> to vector<8x32xf32>
    %25 = vector.extract_strided_slice %21 {offsets = [0, 32], sizes = [8, 32], strides = [1, 1]} : vector<8x96xf32> to vector<8x32xf32>
    %26 = vector.extract_strided_slice %21 {offsets = [0, 64], sizes = [8, 32], strides = [1, 1]} : vector<8x96xf32> to vector<8x32xf32>
    %27 = arith.mulf %25, %10 : vector<8x32xf32>
    %28 = arith.mulf %24, %23 : vector<8x32xf32>
    %29 = arith.addf %27, %28 : vector<8x32xf32>
    %30 = math.tanh %29 : vector<8x32xf32>
    %31 = arith.mulf %26, %30 : vector<8x32xf32>
    %32 = arith.index_cast %c0_i32 : i32 to index
    %c0_16 = arith.constant 0 : index
    %c0_17 = arith.constant 0 : index
    %33 = vector.load %arg10[%32, %c0_16, %c0_17] : memref<8x8x32xf32, #tpu.memory_space<vmem>>, vector<1x8x32xf32>
    %34 = vector.shape_cast %33 : vector<1x8x32xf32> to vector<8x32xf32>
    %35 = vector.shape_cast %31 : vector<8x32xf32> to vector<1x8x32xf32>
    tpu.vector_store %arg10[%32, %c0_16, %c0_17], %35 {strides = array<i32>} : memref<8x8x32xf32, #tpu.memory_space<vmem>>, vector<1x8x32xf32>,
    %c1_i32 = arith.constant 1 : i32
    %36 = arith.index_cast %c1_i32 : i32 to index
    %c0_18 = arith.constant 0 : index
    %c0_19 = arith.constant 0 : index
    %37 = vector.load %arg9[%36, %c0_18, %c0_19] : memref<8x8x128xf32, #tpu.memory_space<vmem>>, vector<1x8x128xf32>
    %38 = vector.shape_cast %37 : vector<1x8x128xf32> to vector<8x128xf32>
    %cst_20 = arith.constant dense<0.000000e+00> : vector<8x128xf32>
    %39 = tpu.matmul %31, %9, %cst_20 {dimension_numbers = #tpu.dot_dimension_numbers<[1], [0], [0], [1], [0, 0, 1, 1], [], []>} : vector<8x32xf32>, vector<32x128xf32>, vector<8x128xf32> -> vector<8x128xf32>
    %40 = arith.addf %38, %39 : vector<8x128xf32>
    %41 = vector.extract_strided_slice %40 {offsets = [0, 0], sizes = [8, 96], strides = [1, 1]} : vector<8x128xf32> to vector<8x96xf32>
    %42 = arith.negf %41 : vector<8x96xf32>
    %43 = math.exp %42 : vector<8x96xf32>
    %cst_21 = arith.constant 1.000000e+00 : f32
    %44 = vector.broadcast %cst_21 : f32 to vector<8x96xf32>
    %45 = arith.addf %44, %43 : vector<8x96xf32>
    %46 = arith.divf %44, %45 : vector<8x96xf32>
    %47 = vector.extract_strided_slice %40 {offsets = [0, 96], sizes = [8, 32], strides = [1, 1]} : vector<8x128xf32> to vector<8x32xf32>
    %48 = math.tanh %47 : vector<8x32xf32>
    %49 = vector.extract_strided_slice %46 {offsets = [0, 0], sizes = [8, 32], strides = [1, 1]} : vector<8x96xf32> to vector<8x32xf32>
    %50 = vector.extract_strided_slice %46 {offsets = [0, 32], sizes = [8, 32], strides = [1, 1]} : vector<8x96xf32> to vector<8x32xf32>
    %51 = vector.extract_strided_slice %46 {offsets = [0, 64], sizes = [8, 32], strides = [1, 1]} : vector<8x96xf32> to vector<8x32xf32>
    %52 = arith.mulf %50, %29 : vector<8x32xf32>
    %53 = arith.mulf %49, %48 : vector<8x32xf32>
    %54 = arith.addf %52, %53 : vector<8x32xf32>
    %55 = math.tanh %54 : vector<8x32xf32>
    %56 = arith.mulf %51, %55 : vector<8x32xf32>
    %57 = arith.index_cast %c1_i32 : i32 to index
    %c0_22 = arith.constant 0 : index
    %c0_23 = arith.constant 0 : index
    %58 = vector.load %arg10[%57, %c0_22, %c0_23] : memref<8x8x32xf32, #tpu.memory_space<vmem>>, vector<1x8x32xf32>
    %59 = vector.shape_cast %58 : vector<1x8x32xf32> to vector<8x32xf32>
    %60 = vector.shape_cast %56 : vector<8x32xf32> to vector<1x8x32xf32>
    tpu.vector_store %arg10[%57, %c0_22, %c0_23], %60 {strides = array<i32>} : memref<8x8x32xf32, #tpu.memory_space<vmem>>, vector<1x8x32xf32>,
    %c2_i32 = arith.constant 2 : i32
    %61 = arith.index_cast %c2_i32 : i32 to index
    %c0_24 = arith.constant 0 : index
    %c0_25 = arith.constant 0 : index
    %62 = vector.load %arg9[%61, %c0_24, %c0_25] : memref<8x8x128xf32, #tpu.memory_space<vmem>>, vector<1x8x128xf32>
    %63 = vector.shape_cast %62 : vector<1x8x128xf32> to vector<8x128xf32>
    %cst_26 = arith.constant dense<0.000000e+00> : vector<8x128xf32>
    %64 = tpu.matmul %56, %9, %cst_26 {dimension_numbers = #tpu.dot_dimension_numbers<[1], [0], [0], [1], [0, 0, 1, 1], [], []>} : vector<8x32xf32>, vector<32x128xf32>, vector<8x128xf32> -> vector<8x128xf32>
    %65 = arith.addf %63, %64 : vector<8x128xf32>
    %66 = vector.extract_strided_slice %65 {offsets = [0, 0], sizes = [8, 96], strides = [1, 1]} : vector<8x128xf32> to vector<8x96xf32>
    %67 = arith.negf %66 : vector<8x96xf32>
    %68 = math.exp %67 : vector<8x96xf32>
    %cst_27 = arith.constant 1.000000e+00 : f32
    %69 = vector.broadcast %cst_27 : f32 to vector<8x96xf32>
    %70 = arith.addf %69, %68 : vector<8x96xf32>
    %71 = arith.divf %69, %70 : vector<8x96xf32>
    %72 = vector.extract_strided_slice %65 {offsets = [0, 96], sizes = [8, 32], strides = [1, 1]} : vector<8x128xf32> to vector<8x32xf32>
    %73 = math.tanh %72 : vector<8x32xf32>
    %74 = vector.extract_strided_slice %71 {offsets = [0, 0], sizes = [8, 32], strides = [1, 1]} : vector<8x96xf32> to vector<8x32xf32>
    %75 = vector.extract_strided_slice %71 {offsets = [0, 32], sizes = [8, 32], strides = [1, 1]} : vector<8x96xf32> to vector<8x32xf32>
    %76 = vector.extract_strided_slice %71 {offsets = [0, 64], sizes = [8, 32], strides = [1, 1]} : vector<8x96xf32> to vector<8x32xf32>
    %77 = arith.mulf %75, %54 : vector<8x32xf32>
    %78 = arith.mulf %74, %73 : vector<8x32xf32>
    %79 = arith.addf %77, %78 : vector<8x32xf32>
    %80 = math.tanh %79 : vector<8x32xf32>
    %81 = arith.mulf %76, %80 : vector<8x32xf32>
    %82 = arith.index_cast %c2_i32 : i32 to index
    %c0_28 = arith.constant 0 : index
    %c0_29 = arith.constant 0 : index
    %83 = vector.load %arg10[%82, %c0_28, %c0_29] : memref<8x8x32xf32, #tpu.memory_space<vmem>>, vector<1x8x32xf32>
    %84 = vector.shape_cast %83 : vector<1x8x32xf32> to vector<8x32xf32>
    %85 = vector.shape_cast %81 : vector<8x32xf32> to vector<1x8x32xf32>
    tpu.vector_store %arg10[%82, %c0_28, %c0_29], %85 {strides = array<i32>} : memref<8x8x32xf32, #tpu.memory_space<vmem>>, vector<1x8x32xf32>,
    %c3_i32 = arith.constant 3 : i32
    %86 = arith.index_cast %c3_i32 : i32 to index
    %c0_30 = arith.constant 0 : index
    %c0_31 = arith.constant 0 : index
    %87 = vector.load %arg9[%86, %c0_30, %c0_31] : memref<8x8x128xf32, #tpu.memory_space<vmem>>, vector<1x8x128xf32>
    %88 = vector.shape_cast %87 : vector<1x8x128xf32> to vector<8x128xf32>
    %cst_32 = arith.constant dense<0.000000e+00> : vector<8x128xf32>
    %89 = tpu.matmul %81, %9, %cst_32 {dimension_numbers = #tpu.dot_dimension_numbers<[1], [0], [0], [1], [0, 0, 1, 1], [], []>} : vector<8x32xf32>, vector<32x128xf32>, vector<8x128xf32> -> vector<8x128xf32>
    %90 = arith.addf %88, %89 : vector<8x128xf32>
    %91 = vector.extract_strided_slice %90 {offsets = [0, 0], sizes = [8, 96], strides = [1, 1]} : vector<8x128xf32> to vector<8x96xf32>
    %92 = arith.negf %91 : vector<8x96xf32>
    %93 = math.exp %92 : vector<8x96xf32>
    %cst_33 = arith.constant 1.000000e+00 : f32
    %94 = vector.broadcast %cst_33 : f32 to vector<8x96xf32>
    %95 = arith.addf %94, %93 : vector<8x96xf32>
    %96 = arith.divf %94, %95 : vector<8x96xf32>
    %97 = vector.extract_strided_slice %90 {offsets = [0, 96], sizes = [8, 32], strides = [1, 1]} : vector<8x128xf32> to vector<8x32xf32>
    %98 = math.tanh %97 : vector<8x32xf32>
    %99 = vector.extract_strided_slice %96 {offsets = [0, 0], sizes = [8, 32], strides = [1, 1]} : vector<8x96xf32> to vector<8x32xf32>
    %100 = vector.extract_strided_slice %96 {offsets = [0, 32], sizes = [8, 32], strides = [1, 1]} : vector<8x96xf32> to vector<8x32xf32>
    %101 = vector.extract_strided_slice %96 {offsets = [0, 64], sizes = [8, 32], strides = [1, 1]} : vector<8x96xf32> to vector<8x32xf32>
    %102 = arith.mulf %100, %79 : vector<8x32xf32>
    %103 = arith.mulf %99, %98 : vector<8x32xf32>
    %104 = arith.addf %102, %103 : vector<8x32xf32>
    %105 = math.tanh %104 : vector<8x32xf32>
    %106 = arith.mulf %101, %105 : vector<8x32xf32>
    %107 = arith.index_cast %c3_i32 : i32 to index
    %c0_34 = arith.constant 0 : index
    %c0_35 = arith.constant 0 : index
    %108 = vector.load %arg10[%107, %c0_34, %c0_35] : memref<8x8x32xf32, #tpu.memory_space<vmem>>, vector<1x8x32xf32>
    %109 = vector.shape_cast %108 : vector<1x8x32xf32> to vector<8x32xf32>
    %110 = vector.shape_cast %106 : vector<8x32xf32> to vector<1x8x32xf32>
    tpu.vector_store %arg10[%107, %c0_34, %c0_35], %110 {strides = array<i32>} : memref<8x8x32xf32, #tpu.memory_space<vmem>>, vector<1x8x32xf32>,
    %c4_i32 = arith.constant 4 : i32
    %111 = arith.index_cast %c4_i32 : i32 to index
    %c0_36 = arith.constant 0 : index
    %c0_37 = arith.constant 0 : index
    %112 = vector.load %arg9[%111, %c0_36, %c0_37] : memref<8x8x128xf32, #tpu.memory_space<vmem>>, vector<1x8x128xf32>
    %113 = vector.shape_cast %112 : vector<1x8x128xf32> to vector<8x128xf32>
    %cst_38 = arith.constant dense<0.000000e+00> : vector<8x128xf32>
    %114 = tpu.matmul %106, %9, %cst_38 {dimension_numbers = #tpu.dot_dimension_numbers<[1], [0], [0], [1], [0, 0, 1, 1], [], []>} : vector<8x32xf32>, vector<32x128xf32>, vector<8x128xf32> -> vector<8x128xf32>
    %115 = arith.addf %113, %114 : vector<8x128xf32>
    %116 = vector.extract_strided_slice %115 {offsets = [0, 0], sizes = [8, 96], strides = [1, 1]} : vector<8x128xf32> to vector<8x96xf32>
    %117 = arith.negf %116 : vector<8x96xf32>
    %118 = math.exp %117 : vector<8x96xf32>
    %cst_39 = arith.constant 1.000000e+00 : f32
    %119 = vector.broadcast %cst_39 : f32 to vector<8x96xf32>
    %120 = arith.addf %119, %118 : vector<8x96xf32>
    %121 = arith.divf %119, %120 : vector<8x96xf32>
    %122 = vector.extract_strided_slice %115 {offsets = [0, 96], sizes = [8, 32], strides = [1, 1]} : vector<8x128xf32> to vector<8x32xf32>
    %123 = math.tanh %122 : vector<8x32xf32>
    %124 = vector.extract_strided_slice %121 {offsets = [0, 0], sizes = [8, 32], strides = [1, 1]} : vector<8x96xf32> to vector<8x32xf32>
    %125 = vector.extract_strided_slice %121 {offsets = [0, 32], sizes = [8, 32], strides = [1, 1]} : vector<8x96xf32> to vector<8x32xf32>
    %126 = vector.extract_strided_slice %121 {offsets = [0, 64], sizes = [8, 32], strides = [1, 1]} : vector<8x96xf32> to vector<8x32xf32>
    %127 = arith.mulf %125, %104 : vector<8x32xf32>
    %128 = arith.mulf %124, %123 : vector<8x32xf32>
    %129 = arith.addf %127, %128 : vector<8x32xf32>
    %130 = math.tanh %129 : vector<8x32xf32>
    %131 = arith.mulf %126, %130 : vector<8x32xf32>
    %132 = arith.index_cast %c4_i32 : i32 to index
    %c0_40 = arith.constant 0 : index
    %c0_41 = arith.constant 0 : index
    %133 = vector.load %arg10[%132, %c0_40, %c0_41] : memref<8x8x32xf32, #tpu.memory_space<vmem>>, vector<1x8x32xf32>
    %134 = vector.shape_cast %133 : vector<1x8x32xf32> to vector<8x32xf32>
    %135 = vector.shape_cast %131 : vector<8x32xf32> to vector<1x8x32xf32>
    tpu.vector_store %arg10[%132, %c0_40, %c0_41], %135 {strides = array<i32>} : memref<8x8x32xf32, #tpu.memory_space<vmem>>, vector<1x8x32xf32>,
    %c5_i32 = arith.constant 5 : i32
    %136 = arith.index_cast %c5_i32 : i32 to index
    %c0_42 = arith.constant 0 : index
    %c0_43 = arith.constant 0 : index
    %137 = vector.load %arg9[%136, %c0_42, %c0_43] : memref<8x8x128xf32, #tpu.memory_space<vmem>>, vector<1x8x128xf32>
    %138 = vector.shape_cast %137 : vector<1x8x128xf32> to vector<8x128xf32>
    %cst_44 = arith.constant dense<0.000000e+00> : vector<8x128xf32>
    %139 = tpu.matmul %131, %9, %cst_44 {dimension_numbers = #tpu.dot_dimension_numbers<[1], [0], [0], [1], [0, 0, 1, 1], [], []>} : vector<8x32xf32>, vector<32x128xf32>, vector<8x128xf32> -> vector<8x128xf32>
    %140 = arith.addf %138, %139 : vector<8x128xf32>
    %141 = vector.extract_strided_slice %140 {offsets = [0, 0], sizes = [8, 96], strides = [1, 1]} : vector<8x128xf32> to vector<8x96xf32>
    %142 = arith.negf %141 : vector<8x96xf32>
    %143 = math.exp %142 : vector<8x96xf32>
    %cst_45 = arith.constant 1.000000e+00 : f32
    %144 = vector.broadcast %cst_45 : f32 to vector<8x96xf32>
    %145 = arith.addf %144, %143 : vector<8x96xf32>
    %146 = arith.divf %144, %145 : vector<8x96xf32>
    %147 = vector.extract_strided_slice %140 {offsets = [0, 96], sizes = [8, 32], strides = [1, 1]} : vector<8x128xf32> to vector<8x32xf32>
    %148 = math.tanh %147 : vector<8x32xf32>
    %149 = vector.extract_strided_slice %146 {offsets = [0, 0], sizes = [8, 32], strides = [1, 1]} : vector<8x96xf32> to vector<8x32xf32>
    %150 = vector.extract_strided_slice %146 {offsets = [0, 32], sizes = [8, 32], strides = [1, 1]} : vector<8x96xf32> to vector<8x32xf32>
    %151 = vector.extract_strided_slice %146 {offsets = [0, 64], sizes = [8, 32], strides = [1, 1]} : vector<8x96xf32> to vector<8x32xf32>
    %152 = arith.mulf %150, %129 : vector<8x32xf32>
    %153 = arith.mulf %149, %148 : vector<8x32xf32>
    %154 = arith.addf %152, %153 : vector<8x32xf32>
    %155 = math.tanh %154 : vector<8x32xf32>
    %156 = arith.mulf %151, %155 : vector<8x32xf32>
    %157 = arith.index_cast %c5_i32 : i32 to index
    %c0_46 = arith.constant 0 : index
    %c0_47 = arith.constant 0 : index
    %158 = vector.load %arg10[%157, %c0_46, %c0_47] : memref<8x8x32xf32, #tpu.memory_space<vmem>>, vector<1x8x32xf32>
    %159 = vector.shape_cast %158 : vector<1x8x32xf32> to vector<8x32xf32>
    %160 = vector.shape_cast %156 : vector<8x32xf32> to vector<1x8x32xf32>
    tpu.vector_store %arg10[%157, %c0_46, %c0_47], %160 {strides = array<i32>} : memref<8x8x32xf32, #tpu.memory_space<vmem>>, vector<1x8x32xf32>,
    %c6_i32 = arith.constant 6 : i32
    %161 = arith.index_cast %c6_i32 : i32 to index
    %c0_48 = arith.constant 0 : index
    %c0_49 = arith.constant 0 : index
    %162 = vector.load %arg9[%161, %c0_48, %c0_49] : memref<8x8x128xf32, #tpu.memory_space<vmem>>, vector<1x8x128xf32>
    %163 = vector.shape_cast %162 : vector<1x8x128xf32> to vector<8x128xf32>
    %cst_50 = arith.constant dense<0.000000e+00> : vector<8x128xf32>
    %164 = tpu.matmul %156, %9, %cst_50 {dimension_numbers = #tpu.dot_dimension_numbers<[1], [0], [0], [1], [0, 0, 1, 1], [], []>} : vector<8x32xf32>, vector<32x128xf32>, vector<8x128xf32> -> vector<8x128xf32>
    %165 = arith.addf %163, %164 : vector<8x128xf32>
    %166 = vector.extract_strided_slice %165 {offsets = [0, 0], sizes = [8, 96], strides = [1, 1]} : vector<8x128xf32> to vector<8x96xf32>
    %167 = arith.negf %166 : vector<8x96xf32>
    %168 = math.exp %167 : vector<8x96xf32>
    %cst_51 = arith.constant 1.000000e+00 : f32
    %169 = vector.broadcast %cst_51 : f32 to vector<8x96xf32>
    %170 = arith.addf %169, %168 : vector<8x96xf32>
    %171 = arith.divf %169, %170 : vector<8x96xf32>
    %172 = vector.extract_strided_slice %165 {offsets = [0, 96], sizes = [8, 32], strides = [1, 1]} : vector<8x128xf32> to vector<8x32xf32>
    %173 = math.tanh %172 : vector<8x32xf32>
    %174 = vector.extract_strided_slice %171 {offsets = [0, 0], sizes = [8, 32], strides = [1, 1]} : vector<8x96xf32> to vector<8x32xf32>
    %175 = vector.extract_strided_slice %171 {offsets = [0, 32], sizes = [8, 32], strides = [1, 1]} : vector<8x96xf32> to vector<8x32xf32>
    %176 = vector.extract_strided_slice %171 {offsets = [0, 64], sizes = [8, 32], strides = [1, 1]} : vector<8x96xf32> to vector<8x32xf32>
    %177 = arith.mulf %175, %154 : vector<8x32xf32>
    %178 = arith.mulf %174, %173 : vector<8x32xf32>
    %179 = arith.addf %177, %178 : vector<8x32xf32>
    %180 = math.tanh %179 : vector<8x32xf32>
    %181 = arith.mulf %176, %180 : vector<8x32xf32>
    %182 = arith.index_cast %c6_i32 : i32 to index
    %c0_52 = arith.constant 0 : index
    %c0_53 = arith.constant 0 : index
    %183 = vector.load %arg10[%182, %c0_52, %c0_53] : memref<8x8x32xf32, #tpu.memory_space<vmem>>, vector<1x8x32xf32>
    %184 = vector.shape_cast %183 : vector<1x8x32xf32> to vector<8x32xf32>
    %185 = vector.shape_cast %181 : vector<8x32xf32> to vector<1x8x32xf32>
    tpu.vector_store %arg10[%182, %c0_52, %c0_53], %185 {strides = array<i32>} : memref<8x8x32xf32, #tpu.memory_space<vmem>>, vector<1x8x32xf32>,
    %c7_i32 = arith.constant 7 : i32
    %186 = arith.index_cast %c7_i32 : i32 to index
    %c0_54 = arith.constant 0 : index
    %c0_55 = arith.constant 0 : index
    %187 = vector.load %arg9[%186, %c0_54, %c0_55] : memref<8x8x128xf32, #tpu.memory_space<vmem>>, vector<1x8x128xf32>
    %188 = vector.shape_cast %187 : vector<1x8x128xf32> to vector<8x128xf32>
    %cst_56 = arith.constant dense<0.000000e+00> : vector<8x128xf32>
    %189 = tpu.matmul %181, %9, %cst_56 {dimension_numbers = #tpu.dot_dimension_numbers<[1], [0], [0], [1], [0, 0, 1, 1], [], []>} : vector<8x32xf32>, vector<32x128xf32>, vector<8x128xf32> -> vector<8x128xf32>
    %190 = arith.addf %188, %189 : vector<8x128xf32>
    %191 = vector.extract_strided_slice %190 {offsets = [0, 0], sizes = [8, 96], strides = [1, 1]} : vector<8x128xf32> to vector<8x96xf32>
    %192 = arith.negf %191 : vector<8x96xf32>
    %193 = math.exp %192 : vector<8x96xf32>
    %cst_57 = arith.constant 1.000000e+00 : f32
    %194 = vector.broadcast %cst_57 : f32 to vector<8x96xf32>
    %195 = arith.addf %194, %193 : vector<8x96xf32>
    %196 = arith.divf %194, %195 : vector<8x96xf32>
    %197 = vector.extract_strided_slice %190 {offsets = [0, 96], sizes = [8, 32], strides = [1, 1]} : vector<8x128xf32> to vector<8x32xf32>
    %198 = math.tanh %197 : vector<8x32xf32>
    %199 = vector.extract_strided_slice %196 {offsets = [0, 0], sizes = [8, 32], strides = [1, 1]} : vector<8x96xf32> to vector<8x32xf32>
    %200 = vector.extract_strided_slice %196 {offsets = [0, 32], sizes = [8, 32], strides = [1, 1]} : vector<8x96xf32> to vector<8x32xf32>
    %201 = vector.extract_strided_slice %196 {offsets = [0, 64], sizes = [8, 32], strides = [1, 1]} : vector<8x96xf32> to vector<8x32xf32>
    %202 = arith.mulf %200, %179 : vector<8x32xf32>
    %203 = arith.mulf %199, %198 : vector<8x32xf32>
    %204 = arith.addf %202, %203 : vector<8x32xf32>
    %205 = math.tanh %204 : vector<8x32xf32>
    %206 = arith.mulf %201, %205 : vector<8x32xf32>
    %207 = arith.index_cast %c7_i32 : i32 to index
    %c0_58 = arith.constant 0 : index
    %c0_59 = arith.constant 0 : index
    %208 = vector.load %arg10[%207, %c0_58, %c0_59] : memref<8x8x32xf32, #tpu.memory_space<vmem>>, vector<1x8x32xf32>
    %209 = vector.shape_cast %208 : vector<1x8x32xf32> to vector<8x32xf32>
    %210 = vector.shape_cast %206 : vector<8x32xf32> to vector<1x8x32xf32>
    tpu.vector_store %arg10[%207, %c0_58, %c0_59], %210 {strides = array<i32>} : memref<8x8x32xf32, #tpu.memory_space<vmem>>, vector<1x8x32xf32>,
    %c8_i32 = arith.constant 8 : i32
    %c0_60 = arith.constant 0 : index
    %c0_61 = arith.constant 0 : index
    %c0_62 = arith.constant 0 : index
    %211 = vector.load %arg7[%c0_60, %c0_61, %c0_62] : memref<2x8x32xf32, #tpu.memory_space<vmem>>, vector<1x8x32xf32>
    %212 = vector.shape_cast %211 : vector<1x8x32xf32> to vector<8x32xf32>
    %213 = vector.shape_cast %206 : vector<8x32xf32> to vector<1x8x32xf32>
    tpu.vector_store %arg7[%c0_60, %c0_61, %c0_62], %213 {strides = array<i32>} : memref<2x8x32xf32, #tpu.memory_space<vmem>>, vector<1x8x32xf32>,
    %c0_63 = arith.constant 0 : index
    %c0_64 = arith.constant 0 : index
    %c0_65 = arith.constant 0 : index
    %214 = vector.load %arg8[%c0_63, %c0_64, %c0_65] : memref<2x8x32xf32, #tpu.memory_space<vmem>>, vector<1x8x32xf32>
    %215 = vector.shape_cast %214 : vector<1x8x32xf32> to vector<8x32xf32>
    %216 = vector.shape_cast %204 : vector<8x32xf32> to vector<1x8x32xf32>
    tpu.vector_store %arg8[%c0_63, %c0_64, %c0_65], %216 {strides = array<i32>} : memref<2x8x32xf32, #tpu.memory_space<vmem>>, vector<1x8x32xf32>,
    %c0_66 = arith.constant 0 : index
    %c0_67 = arith.constant 0 : index
    %c0_68 = arith.constant 0 : index
    %217 = vector.load %arg10[%c0_66, %c0_67, %c0_68] : memref<8x8x32xf32, #tpu.memory_space<vmem>>, vector<8x8x32xf32>
    %218 = vector.shape_cast %217 : vector<8x8x32xf32> to vector<64x32xf32>
    %c0_69 = arith.constant 0 : index
    %c0_70 = arith.constant 0 : index
    %219 = vector.load %arg4[%c0_69, %c0_70] : memref<32x128xf32, #tpu.memory_space<vmem>>, vector<32x128xf32>
    %cst_71 = arith.constant dense<0.000000e+00> : vector<64x128xf32>
    %220 = tpu.matmul %218, %219, %cst_71 {dimension_numbers = #tpu.dot_dimension_numbers<[1], [0], [0], [1], [0, 0, 1, 1], [], []>} : vector<64x32xf32>, vector<32x128xf32>, vector<64x128xf32> -> vector<64x128xf32>
    %c0_72 = arith.constant 0 : index
    %c0_73 = arith.constant 0 : index
    %221 = vector.load %arg6[%c0_72, %c0_73] : memref<1x128xf32, #tpu.memory_space<vmem>>, vector<1x128xf32>
    %222 = vector.broadcast %221 : vector<1x128xf32> to vector<64x128xf32>
    %223 = arith.addf %220, %222 : vector<64x128xf32>
    %224 = vector.shape_cast %223 : vector<64x128xf32> to vector<8x8x128xf32>
    %c0_74 = arith.constant 0 : index
    %c0_75 = arith.constant 0 : index
    %c0_76 = arith.constant 0 : index
    %225 = vector.load %arg9[%c0_74, %c0_75, %c0_76] : memref<8x8x128xf32, #tpu.memory_space<vmem>>, vector<8x8x128xf32>
    tpu.vector_store %arg9[%c0_74, %c0_75, %c0_76], %224 {strides = array<i32>} : memref<8x8x128xf32, #tpu.memory_space<vmem>>, vector<8x8x128xf32>,
    %c0_77 = arith.constant 0 : index
    %c0_78 = arith.constant 0 : index
    %226 = vector.load %arg5[%c0_77, %c0_78] : memref<32x128xf32, #tpu.memory_space<vmem>>, vector<32x128xf32>
    %cst_79 = arith.constant 0.000000e+00 : f32
    %227 = vector.broadcast %cst_79 : f32 to vector<8x32xf32>
    %c0_i32_80 = arith.constant 0 : i32
    %228 = arith.index_cast %c0_i32_80 : i32 to index
    %c0_81 = arith.constant 0 : index
    %c0_82 = arith.constant 0 : index
    %229 = vector.load %arg9[%228, %c0_81, %c0_82] : memref<8x8x128xf32, #tpu.memory_space<vmem>>, vector<1x8x128xf32>
    %230 = vector.shape_cast %229 : vector<1x8x128xf32> to vector<8x128xf32>
    %cst_83 = arith.constant dense<0.000000e+00> : vector<8x128xf32>
    %231 = tpu.matmul %227, %226, %cst_83 {dimension_numbers = #tpu.dot_dimension_numbers<[1], [0], [0], [1], [0, 0, 1, 1], [], []>} : vector<8x32xf32>, vector<32x128xf32>, vector<8x128xf32> -> vector<8x128xf32>
    %232 = arith.addf %230, %231 : vector<8x128xf32>
    %233 = vector.extract_strided_slice %232 {offsets = [0, 0], sizes = [8, 96], strides = [1, 1]} : vector<8x128xf32> to vector<8x96xf32>
    %234 = arith.negf %233 : vector<8x96xf32>
    %235 = math.exp %234 : vector<8x96xf32>
    %cst_84 = arith.constant 1.000000e+00 : f32
    %236 = vector.broadcast %cst_84 : f32 to vector<8x96xf32>
    %237 = arith.addf %236, %235 : vector<8x96xf32>
    %238 = arith.divf %236, %237 : vector<8x96xf32>
    %239 = vector.extract_strided_slice %232 {offsets = [0, 96], sizes = [8, 32], strides = [1, 1]} : vector<8x128xf32> to vector<8x32xf32>
    %240 = math.tanh %239 : vector<8x32xf32>
    %241 = vector.extract_strided_slice %238 {offsets = [0, 0], sizes = [8, 32], strides = [1, 1]} : vector<8x96xf32> to vector<8x32xf32>
    %242 = vector.extract_strided_slice %238 {offsets = [0, 32], sizes = [8, 32], strides = [1, 1]} : vector<8x96xf32> to vector<8x32xf32>
    %243 = vector.extract_strided_slice %238 {offsets = [0, 64], sizes = [8, 32], strides = [1, 1]} : vector<8x96xf32> to vector<8x32xf32>
    %244 = arith.mulf %242, %227 : vector<8x32xf32>
    %245 = arith.mulf %241, %240 : vector<8x32xf32>
    %246 = arith.addf %244, %245 : vector<8x32xf32>
    %247 = math.tanh %246 : vector<8x32xf32>
    %248 = arith.mulf %243, %247 : vector<8x32xf32>
    %c1_i32_85 = arith.constant 1 : i32
    %249 = arith.index_cast %c1_i32_85 : i32 to index
    %c0_86 = arith.constant 0 : index
    %c0_87 = arith.constant 0 : index
    %250 = vector.load %arg9[%249, %c0_86, %c0_87] : memref<8x8x128xf32, #tpu.memory_space<vmem>>, vector<1x8x128xf32>
    %251 = vector.shape_cast %250 : vector<1x8x128xf32> to vector<8x128xf32>
    %cst_88 = arith.constant dense<0.000000e+00> : vector<8x128xf32>
    %252 = tpu.matmul %248, %226, %cst_88 {dimension_numbers = #tpu.dot_dimension_numbers<[1], [0], [0], [1], [0, 0, 1, 1], [], []>} : vector<8x32xf32>, vector<32x128xf32>, vector<8x128xf32> -> vector<8x128xf32>
    %253 = arith.addf %251, %252 : vector<8x128xf32>
    %254 = vector.extract_strided_slice %253 {offsets = [0, 0], sizes = [8, 96], strides = [1, 1]} : vector<8x128xf32> to vector<8x96xf32>
    %255 = arith.negf %254 : vector<8x96xf32>
    %256 = math.exp %255 : vector<8x96xf32>
    %cst_89 = arith.constant 1.000000e+00 : f32
    %257 = vector.broadcast %cst_89 : f32 to vector<8x96xf32>
    %258 = arith.addf %257, %256 : vector<8x96xf32>
    %259 = arith.divf %257, %258 : vector<8x96xf32>
    %260 = vector.extract_strided_slice %253 {offsets = [0, 96], sizes = [8, 32], strides = [1, 1]} : vector<8x128xf32> to vector<8x32xf32>
    %261 = math.tanh %260 : vector<8x32xf32>
    %262 = vector.extract_strided_slice %259 {offsets = [0, 0], sizes = [8, 32], strides = [1, 1]} : vector<8x96xf32> to vector<8x32xf32>
    %263 = vector.extract_strided_slice %259 {offsets = [0, 32], sizes = [8, 32], strides = [1, 1]} : vector<8x96xf32> to vector<8x32xf32>
    %264 = vector.extract_strided_slice %259 {offsets = [0, 64], sizes = [8, 32], strides = [1, 1]} : vector<8x96xf32> to vector<8x32xf32>
    %265 = arith.mulf %263, %246 : vector<8x32xf32>
    %266 = arith.mulf %262, %261 : vector<8x32xf32>
    %267 = arith.addf %265, %266 : vector<8x32xf32>
    %268 = math.tanh %267 : vector<8x32xf32>
    %269 = arith.mulf %264, %268 : vector<8x32xf32>
    %c2_i32_90 = arith.constant 2 : i32
    %270 = arith.index_cast %c2_i32_90 : i32 to index
    %c0_91 = arith.constant 0 : index
    %c0_92 = arith.constant 0 : index
    %271 = vector.load %arg9[%270, %c0_91, %c0_92] : memref<8x8x128xf32, #tpu.memory_space<vmem>>, vector<1x8x128xf32>
    %272 = vector.shape_cast %271 : vector<1x8x128xf32> to vector<8x128xf32>
    %cst_93 = arith.constant dense<0.000000e+00> : vector<8x128xf32>
    %273 = tpu.matmul %269, %226, %cst_93 {dimension_numbers = #tpu.dot_dimension_numbers<[1], [0], [0], [1], [0, 0, 1, 1], [], []>} : vector<8x32xf32>, vector<32x128xf32>, vector<8x128xf32> -> vector<8x128xf32>
    %274 = arith.addf %272, %273 : vector<8x128xf32>
    %275 = vector.extract_strided_slice %274 {offsets = [0, 0], sizes = [8, 96], strides = [1, 1]} : vector<8x128xf32> to vector<8x96xf32>
    %276 = arith.negf %275 : vector<8x96xf32>
    %277 = math.exp %276 : vector<8x96xf32>
    %cst_94 = arith.constant 1.000000e+00 : f32
    %278 = vector.broadcast %cst_94 : f32 to vector<8x96xf32>
    %279 = arith.addf %278, %277 : vector<8x96xf32>
    %280 = arith.divf %278, %279 : vector<8x96xf32>
    %281 = vector.extract_strided_slice %274 {offsets = [0, 96], sizes = [8, 32], strides = [1, 1]} : vector<8x128xf32> to vector<8x32xf32>
    %282 = math.tanh %281 : vector<8x32xf32>
    %283 = vector.extract_strided_slice %280 {offsets = [0, 0], sizes = [8, 32], strides = [1, 1]} : vector<8x96xf32> to vector<8x32xf32>
    %284 = vector.extract_strided_slice %280 {offsets = [0, 32], sizes = [8, 32], strides = [1, 1]} : vector<8x96xf32> to vector<8x32xf32>
    %285 = vector.extract_strided_slice %280 {offsets = [0, 64], sizes = [8, 32], strides = [1, 1]} : vector<8x96xf32> to vector<8x32xf32>
    %286 = arith.mulf %284, %267 : vector<8x32xf32>
    %287 = arith.mulf %283, %282 : vector<8x32xf32>
    %288 = arith.addf %286, %287 : vector<8x32xf32>
    %289 = math.tanh %288 : vector<8x32xf32>
    %290 = arith.mulf %285, %289 : vector<8x32xf32>
    %c3_i32_95 = arith.constant 3 : i32
    %291 = arith.index_cast %c3_i32_95 : i32 to index
    %c0_96 = arith.constant 0 : index
    %c0_97 = arith.constant 0 : index
    %292 = vector.load %arg9[%291, %c0_96, %c0_97] : memref<8x8x128xf32, #tpu.memory_space<vmem>>, vector<1x8x128xf32>
    %293 = vector.shape_cast %292 : vector<1x8x128xf32> to vector<8x128xf32>
    %cst_98 = arith.constant dense<0.000000e+00> : vector<8x128xf32>
    %294 = tpu.matmul %290, %226, %cst_98 {dimension_numbers = #tpu.dot_dimension_numbers<[1], [0], [0], [1], [0, 0, 1, 1], [], []>} : vector<8x32xf32>, vector<32x128xf32>, vector<8x128xf32> -> vector<8x128xf32>
    %295 = arith.addf %293, %294 : vector<8x128xf32>
    %296 = vector.extract_strided_slice %295 {offsets = [0, 0], sizes = [8, 96], strides = [1, 1]} : vector<8x128xf32> to vector<8x96xf32>
    %297 = arith.negf %296 : vector<8x96xf32>
    %298 = math.exp %297 : vector<8x96xf32>
    %cst_99 = arith.constant 1.000000e+00 : f32
    %299 = vector.broadcast %cst_99 : f32 to vector<8x96xf32>
    %300 = arith.addf %299, %298 : vector<8x96xf32>
    %301 = arith.divf %299, %300 : vector<8x96xf32>
    %302 = vector.extract_strided_slice %295 {offsets = [0, 96], sizes = [8, 32], strides = [1, 1]} : vector<8x128xf32> to vector<8x32xf32>
    %303 = math.tanh %302 : vector<8x32xf32>
    %304 = vector.extract_strided_slice %301 {offsets = [0, 0], sizes = [8, 32], strides = [1, 1]} : vector<8x96xf32> to vector<8x32xf32>
    %305 = vector.extract_strided_slice %301 {offsets = [0, 32], sizes = [8, 32], strides = [1, 1]} : vector<8x96xf32> to vector<8x32xf32>
    %306 = vector.extract_strided_slice %301 {offsets = [0, 64], sizes = [8, 32], strides = [1, 1]} : vector<8x96xf32> to vector<8x32xf32>
    %307 = arith.mulf %305, %288 : vector<8x32xf32>
    %308 = arith.mulf %304, %303 : vector<8x32xf32>
    %309 = arith.addf %307, %308 : vector<8x32xf32>
    %310 = math.tanh %309 : vector<8x32xf32>
    %311 = arith.mulf %306, %310 : vector<8x32xf32>
    %c4_i32_100 = arith.constant 4 : i32
    %312 = arith.index_cast %c4_i32_100 : i32 to index
    %c0_101 = arith.constant 0 : index
    %c0_102 = arith.constant 0 : index
    %313 = vector.load %arg9[%312, %c0_101, %c0_102] : memref<8x8x128xf32, #tpu.memory_space<vmem>>, vector<1x8x128xf32>
    %314 = vector.shape_cast %313 : vector<1x8x128xf32> to vector<8x128xf32>
    %cst_103 = arith.constant dense<0.000000e+00> : vector<8x128xf32>
    %315 = tpu.matmul %311, %226, %cst_103 {dimension_numbers = #tpu.dot_dimension_numbers<[1], [0], [0], [1], [0, 0, 1, 1], [], []>} : vector<8x32xf32>, vector<32x128xf32>, vector<8x128xf32> -> vector<8x128xf32>
    %316 = arith.addf %314, %315 : vector<8x128xf32>
    %317 = vector.extract_strided_slice %316 {offsets = [0, 0], sizes = [8, 96], strides = [1, 1]} : vector<8x128xf32> to vector<8x96xf32>
    %318 = arith.negf %317 : vector<8x96xf32>
    %319 = math.exp %318 : vector<8x96xf32>
    %cst_104 = arith.constant 1.000000e+00 : f32
    %320 = vector.broadcast %cst_104 : f32 to vector<8x96xf32>
    %321 = arith.addf %320, %319 : vector<8x96xf32>
    %322 = arith.divf %320, %321 : vector<8x96xf32>
    %323 = vector.extract_strided_slice %316 {offsets = [0, 96], sizes = [8, 32], strides = [1, 1]} : vector<8x128xf32> to vector<8x32xf32>
    %324 = math.tanh %323 : vector<8x32xf32>
    %325 = vector.extract_strided_slice %322 {offsets = [0, 0], sizes = [8, 32], strides = [1, 1]} : vector<8x96xf32> to vector<8x32xf32>
    %326 = vector.extract_strided_slice %322 {offsets = [0, 32], sizes = [8, 32], strides = [1, 1]} : vector<8x96xf32> to vector<8x32xf32>
    %327 = vector.extract_strided_slice %322 {offsets = [0, 64], sizes = [8, 32], strides = [1, 1]} : vector<8x96xf32> to vector<8x32xf32>
    %328 = arith.mulf %326, %309 : vector<8x32xf32>
    %329 = arith.mulf %325, %324 : vector<8x32xf32>
    %330 = arith.addf %328, %329 : vector<8x32xf32>
    %331 = math.tanh %330 : vector<8x32xf32>
    %332 = arith.mulf %327, %331 : vector<8x32xf32>
    %c5_i32_105 = arith.constant 5 : i32
    %333 = arith.index_cast %c5_i32_105 : i32 to index
    %c0_106 = arith.constant 0 : index
    %c0_107 = arith.constant 0 : index
    %334 = vector.load %arg9[%333, %c0_106, %c0_107] : memref<8x8x128xf32, #tpu.memory_space<vmem>>, vector<1x8x128xf32>
    %335 = vector.shape_cast %334 : vector<1x8x128xf32> to vector<8x128xf32>
    %cst_108 = arith.constant dense<0.000000e+00> : vector<8x128xf32>
    %336 = tpu.matmul %332, %226, %cst_108 {dimension_numbers = #tpu.dot_dimension_numbers<[1], [0], [0], [1], [0, 0, 1, 1], [], []>} : vector<8x32xf32>, vector<32x128xf32>, vector<8x128xf32> -> vector<8x128xf32>
    %337 = arith.addf %335, %336 : vector<8x128xf32>
    %338 = vector.extract_strided_slice %337 {offsets = [0, 0], sizes = [8, 96], strides = [1, 1]} : vector<8x128xf32> to vector<8x96xf32>
    %339 = arith.negf %338 : vector<8x96xf32>
    %340 = math.exp %339 : vector<8x96xf32>
    %cst_109 = arith.constant 1.000000e+00 : f32
    %341 = vector.broadcast %cst_109 : f32 to vector<8x96xf32>
    %342 = arith.addf %341, %340 : vector<8x96xf32>
    %343 = arith.divf %341, %342 : vector<8x96xf32>
    %344 = vector.extract_strided_slice %337 {offsets = [0, 96], sizes = [8, 32], strides = [1, 1]} : vector<8x128xf32> to vector<8x32xf32>
    %345 = math.tanh %344 : vector<8x32xf32>
    %346 = vector.extract_strided_slice %343 {offsets = [0, 0], sizes = [8, 32], strides = [1, 1]} : vector<8x96xf32> to vector<8x32xf32>
    %347 = vector.extract_strided_slice %343 {offsets = [0, 32], sizes = [8, 32], strides = [1, 1]} : vector<8x96xf32> to vector<8x32xf32>
    %348 = vector.extract_strided_slice %343 {offsets = [0, 64], sizes = [8, 32], strides = [1, 1]} : vector<8x96xf32> to vector<8x32xf32>
    %349 = arith.mulf %347, %330 : vector<8x32xf32>
    %350 = arith.mulf %346, %345 : vector<8x32xf32>
    %351 = arith.addf %349, %350 : vector<8x32xf32>
    %352 = math.tanh %351 : vector<8x32xf32>
    %353 = arith.mulf %348, %352 : vector<8x32xf32>
    %c6_i32_110 = arith.constant 6 : i32
    %354 = arith.index_cast %c6_i32_110 : i32 to index
    %c0_111 = arith.constant 0 : index
    %c0_112 = arith.constant 0 : index
    %355 = vector.load %arg9[%354, %c0_111, %c0_112] : memref<8x8x128xf32, #tpu.memory_space<vmem>>, vector<1x8x128xf32>
    %356 = vector.shape_cast %355 : vector<1x8x128xf32> to vector<8x128xf32>
    %cst_113 = arith.constant dense<0.000000e+00> : vector<8x128xf32>
    %357 = tpu.matmul %353, %226, %cst_113 {dimension_numbers = #tpu.dot_dimension_numbers<[1], [0], [0], [1], [0, 0, 1, 1], [], []>} : vector<8x32xf32>, vector<32x128xf32>, vector<8x128xf32> -> vector<8x128xf32>
    %358 = arith.addf %356, %357 : vector<8x128xf32>
    %359 = vector.extract_strided_slice %358 {offsets = [0, 0], sizes = [8, 96], strides = [1, 1]} : vector<8x128xf32> to vector<8x96xf32>
    %360 = arith.negf %359 : vector<8x96xf32>
    %361 = math.exp %360 : vector<8x96xf32>
    %cst_114 = arith.constant 1.000000e+00 : f32
    %362 = vector.broadcast %cst_114 : f32 to vector<8x96xf32>
    %363 = arith.addf %362, %361 : vector<8x96xf32>
    %364 = arith.divf %362, %363 : vector<8x96xf32>
    %365 = vector.extract_strided_slice %358 {offsets = [0, 96], sizes = [8, 32], strides = [1, 1]} : vector<8x128xf32> to vector<8x32xf32>
    %366 = math.tanh %365 : vector<8x32xf32>
    %367 = vector.extract_strided_slice %364 {offsets = [0, 0], sizes = [8, 32], strides = [1, 1]} : vector<8x96xf32> to vector<8x32xf32>
    %368 = vector.extract_strided_slice %364 {offsets = [0, 32], sizes = [8, 32], strides = [1, 1]} : vector<8x96xf32> to vector<8x32xf32>
    %369 = vector.extract_strided_slice %364 {offsets = [0, 64], sizes = [8, 32], strides = [1, 1]} : vector<8x96xf32> to vector<8x32xf32>
    %370 = arith.mulf %368, %351 : vector<8x32xf32>
    %371 = arith.mulf %367, %366 : vector<8x32xf32>
    %372 = arith.addf %370, %371 : vector<8x32xf32>
    %373 = math.tanh %372 : vector<8x32xf32>
    %374 = arith.mulf %369, %373 : vector<8x32xf32>
    %c7_i32_115 = arith.constant 7 : i32
    %375 = arith.index_cast %c7_i32_115 : i32 to index
    %c0_116 = arith.constant 0 : index
    %c0_117 = arith.constant 0 : index
    %376 = vector.load %arg9[%375, %c0_116, %c0_117] : memref<8x8x128xf32, #tpu.memory_space<vmem>>, vector<1x8x128xf32>
    %377 = vector.shape_cast %376 : vector<1x8x128xf32> to vector<8x128xf32>
    %cst_118 = arith.constant dense<0.000000e+00> : vector<8x128xf32>
    %378 = tpu.matmul %374, %226, %cst_118 {dimension_numbers = #tpu.dot_dimension_numbers<[1], [0], [0], [1], [0, 0, 1, 1], [], []>} : vector<8x32xf32>, vector<32x128xf32>, vector<8x128xf32> -> vector<8x128xf32>
    %379 = arith.addf %377, %378 : vector<8x128xf32>
    %380 = vector.extract_strided_slice %379 {offsets = [0, 0], sizes = [8, 96], strides = [1, 1]} : vector<8x128xf32> to vector<8x96xf32>
    %381 = arith.negf %380 : vector<8x96xf32>
    %382 = math.exp %381 : vector<8x96xf32>
    %cst_119 = arith.constant 1.000000e+00 : f32
    %383 = vector.broadcast %cst_119 : f32 to vector<8x96xf32>
    %384 = arith.addf %383, %382 : vector<8x96xf32>
    %385 = arith.divf %383, %384 : vector<8x96xf32>
    %386 = vector.extract_strided_slice %379 {offsets = [0, 96], sizes = [8, 32], strides = [1, 1]} : vector<8x128xf32> to vector<8x32xf32>
    %387 = math.tanh %386 : vector<8x32xf32>
    %388 = vector.extract_strided_slice %385 {offsets = [0, 0], sizes = [8, 32], strides = [1, 1]} : vector<8x96xf32> to vector<8x32xf32>
    %389 = vector.extract_strided_slice %385 {offsets = [0, 32], sizes = [8, 32], strides = [1, 1]} : vector<8x96xf32> to vector<8x32xf32>
    %390 = vector.extract_strided_slice %385 {offsets = [0, 64], sizes = [8, 32], strides = [1, 1]} : vector<8x96xf32> to vector<8x32xf32>
    %391 = arith.mulf %389, %372 : vector<8x32xf32>
    %392 = arith.mulf %388, %387 : vector<8x32xf32>
    %393 = arith.addf %391, %392 : vector<8x32xf32>
    %394 = math.tanh %393 : vector<8x32xf32>
    %395 = arith.mulf %390, %394 : vector<8x32xf32>
    %c8_i32_120 = arith.constant 8 : i32
    %c1 = arith.constant 1 : index
    %c0_121 = arith.constant 0 : index
    %c0_122 = arith.constant 0 : index
    %396 = vector.load %arg7[%c1, %c0_121, %c0_122] : memref<2x8x32xf32, #tpu.memory_space<vmem>>, vector<1x8x32xf32>
    %397 = vector.shape_cast %396 : vector<1x8x32xf32> to vector<8x32xf32>
    %398 = vector.shape_cast %395 : vector<8x32xf32> to vector<1x8x32xf32>
    tpu.vector_store %arg7[%c1, %c0_121, %c0_122], %398 {strides = array<i32>} : memref<2x8x32xf32, #tpu.memory_space<vmem>>, vector<1x8x32xf32>,
    %c1_123 = arith.constant 1 : index
    %c0_124 = arith.constant 0 : index
    %c0_125 = arith.constant 0 : index
    %399 = vector.load %arg8[%c1_123, %c0_124, %c0_125] : memref<2x8x32xf32, #tpu.memory_space<vmem>>, vector<1x8x32xf32>
    %400 = vector.shape_cast %399 : vector<1x8x32xf32> to vector<8x32xf32>
    %401 = vector.shape_cast %393 : vector<8x32xf32> to vector<1x8x32xf32>
    tpu.vector_store %arg8[%c1_123, %c0_124, %c0_125], %401 {strides = array<i32>} : memref<2x8x32xf32, #tpu.memory_space<vmem>>, vector<1x8x32xf32>,
    return
  }
}

</mosaic_0001>

<llo_original>
// kernel: tpu_custom_call.1
$region0: #{tpu_custom_call.1}
  #allocation0 [shape = 'u32[]', space=smem, size = 0x4, offset = 0x4, fixed_abs, tag = 'smem constant byte address 0x4 - core index']
  #allocation1 [shape = 'u32[72,128]{1,0:T(1,128)}', space=vmem, size = 0x9000, scoped, tag = 'internal scratch']
  #allocation2 [shape = 'f32[8,8,128]{2,1,0:T(8,128)}', space=vmem, size = 0x8000, scoped, tag = 'scratch operand']
  #allocation3 [shape = 'f32[8,8,32]{2,1,0:T(8,128)}', space=vmem, size = 0x8000, scoped, tag = 'scratch operand']
  %s0 = inlined_call_operand.hbm [shape: f32[8,8,32], index: 0, kind: input, shape index: {}]
  %s1 = inlined_call_operand.hbm [shape: f32[32,128], index: 1, kind: input, shape index: {}]
  %s2 = inlined_call_operand.hbm [shape: f32[32,128], index: 2, kind: input, shape index: {}]
  %s3 = inlined_call_operand.vmem [shape: f32[1,128], index: 3, kind: input, shape index: {}]
  %s4 = inlined_call_operand.hbm [shape: f32[32,128], index: 4, kind: input, shape index: {}]
  %s5 = inlined_call_operand.hbm [shape: f32[32,128], index: 5, kind: input, shape index: {}]
  %s6 = inlined_call_operand.vmem [shape: f32[1,128], index: 6, kind: input, shape index: {}]
  %s7 = inlined_call_operand.hbm [shape: f32[2,8,32], index: 7, kind: output, shape index: {0}]
  %s8 = inlined_call_operand.hbm [shape: f32[2,8,32], index: 8, kind: output, shape index: {1}]
  %9 = xla_tuple %s7, %s8
  %s10 = sld [smem:[#allocation0]]
  $region66: #{tpu_custom_call.1} parent=0
    _
  %s12 = ssub.s32 1, %s10
  %s13 = scalar_select 0, %s12, %s10
  $region1: #{tpu_custom_call.1} parent=0
    #allocation4 [shape = 'u8[32768]{0}', space=vmem, size = 0x8000, scoped, tag = 'input window, operand 0, single buffered']
    #allocation5 [shape = 's32[1]{0}', space=sflag, size = 0x4, scoped, tag = 'scoped memory for tpu_custom_call.1']
    #allocation6 [shape = 's32[1]{0}', space=sflag, size = 0x4, scoped, tag = 'scoped memory for tpu_custom_call.1']
    #allocation7 [shape = 'u8[16384]{0}', space=vmem, size = 0x4000, scoped, tag = 'input window, operand 1, single buffered']
    #allocation8 [shape = 's32[1]{0}', space=sflag, size = 0x4, scoped, tag = 'scoped memory for tpu_custom_call.1']
    #allocation9 [shape = 'u8[16384]{0}', space=vmem, size = 0x4000, scoped, tag = 'input window, operand 2, single buffered']
    #allocation10 [shape = 'u8[16384]{0}', space=vmem, size = 0x4000, scoped, tag = 'input window, operand 4, single buffered']
    #allocation11 [shape = 's32[1]{0}', space=sflag, size = 0x4, scoped, tag = 'scoped memory for tpu_custom_call.1']
    #allocation12 [shape = 'u8[16384]{0}', space=vmem, size = 0x4000, scoped, tag = 'input window, operand 5, single buffered']
    #allocation13 [shape = 'u8[8192]{0}', space=vmem, size = 0x2000, scoped, tag = 'output window, operand 0, single buffered']
    #allocation14 [shape = 'u8[8192]{0}', space=vmem, size = 0x2000, scoped, tag = 'output window, operand 1, single buffered']
    #allocation15 [shape = 's32[1]{0}', space=sflag, size = 0x4, scoped, tag = 'scoped memory for tpu_custom_call.1']
    %14 = vsyncpa [#allocation5], 0
    %15 = vsyncpa [#allocation8], 0
    %16 = vsyncpa [#allocation11], 0
    %17 = vsyncpa [#allocation6], 0
    %18 = vsyncpa [#allocation15], 0
    // Predicated region
    $region2: #{tpu_custom_call.1} parent=1 // pred_check
      _
    $region3: #{tpu_custom_call.1} parent=1 // pred_check_branch
      %20 = sbr.rel (0) target = $region5
    $region4: #{tpu_custom_call.1} parent=1 // pred_region
      %22 = vsyncadd [#allocation5], 0
      %s23 = sshll.u32 %s0, 4
      %s24 = int_to_ptr.hbm [resolvable:$true] %s23
      %s25 = sshll.u32 [#allocation4], 4
      %s26 = int_to_ptr.vmem [resolvable:$true] %s25
      %31 = dma.hbm_to_vmem [thread:$0]  %s24, 1024, %s26, [#allocation5], 128, 128, 8
    $region5: #{tpu_custom_call.1} parent=1 // pred_fallthru
      _
    // Predicated region
    $region6: #{tpu_custom_call.1} parent=1 // pred_check
      _
    $region7: #{tpu_custom_call.1} parent=1 // pred_check_branch
      %33 = sbr.rel (0) target = $region9
    $region8: #{tpu_custom_call.1} parent=1 // pred_region
      %35 = vsyncadd [#allocation8], 0
      %s36 = sshll.u32 %s1, 4
      %s37 = int_to_ptr.hbm [resolvable:$true] %s36
      %s38 = sshll.u32 [#allocation7], 4
      %s39 = int_to_ptr.vmem [resolvable:$true] %s38
      %44 = dma.hbm_to_vmem [thread:$0]  %s37, 512, %s39, [#allocation8], 128, 128, 8
    $region9: #{tpu_custom_call.1} parent=1 // pred_fallthru
      _
    // Predicated region
    $region10: #{tpu_custom_call.1} parent=1 // pred_check
      _
    $region11: #{tpu_custom_call.1} parent=1 // pred_check_branch
      %46 = sbr.rel (0) target = $region13
    $region12: #{tpu_custom_call.1} parent=1 // pred_region
      %48 = vsyncadd [#allocation8], 0
      %s49 = sshll.u32 %s2, 4
      %s50 = int_to_ptr.hbm [resolvable:$true] %s49
      %s51 = sshll.u32 [#allocation9], 4
      %s52 = int_to_ptr.vmem [resolvable:$true] %s51
      %57 = dma.hbm_to_vmem [thread:$0]  %s50, 512, %s52, [#allocation8], 128, 128, 8
    $region13: #{tpu_custom_call.1} parent=1 // pred_fallthru
      _
    // Predicated region
    $region14: #{tpu_custom_call.1} parent=1 // pred_check
      _
    $region15: #{tpu_custom_call.1} parent=1 // pred_check_branch
      %59 = sbr.rel (0) target = $region17
    $region16: #{tpu_custom_call.1} parent=1 // pred_region
      _
    $region17: #{tpu_custom_call.1} parent=1 // pred_fallthru
      _
    // Predicated region
    $region18: #{tpu_custom_call.1} parent=1 // pred_check
      _
    $region19: #{tpu_custom_call.1} parent=1 // pred_check_branch
      %61 = sbr.rel (0) target = $region21
    $region20: #{tpu_custom_call.1} parent=1 // pred_region
      %63 = vsyncadd [#allocation11], 0
      %s64 = sshll.u32 %s4, 4
      %s65 = int_to_ptr.hbm [resolvable:$true] %s64
      %s66 = sshll.u32 [#allocation10], 4
      %s67 = int_to_ptr.vmem [resolvable:$true] %s66
      %72 = dma.hbm_to_vmem [thread:$0]  %s65, 512, %s67, [#allocation11], 128, 128, 8
    $region21: #{tpu_custom_call.1} parent=1 // pred_fallthru
      _
    // Predicated region
    $region22: #{tpu_custom_call.1} parent=1 // pred_check
      _
    $region23: #{tpu_custom_call.1} parent=1 // pred_check_branch
      %74 = sbr.rel (0) target = $region25
    $region24: #{tpu_custom_call.1} parent=1 // pred_region
      %76 = vsyncadd [#allocation11], 0
      %s77 = sshll.u32 %s5, 4
      %s78 = int_to_ptr.hbm [resolvable:$true] %s77
      %s79 = sshll.u32 [#allocation12], 4
      %s80 = int_to_ptr.vmem [resolvable:$true] %s79
      %85 = dma.hbm_to_vmem [thread:$0]  %s78, 512, %s80, [#allocation11], 128, 128, 8
    $region25: #{tpu_custom_call.1} parent=1 // pred_fallthru
      _
    // Predicated region
    $region26: #{tpu_custom_call.1} parent=1 // pred_check
      _
    $region27: #{tpu_custom_call.1} parent=1 // pred_check_branch
      %87 = sbr.rel (0) target = $region29
    $region28: #{tpu_custom_call.1} parent=1 // pred_region
      _
    $region29: #{tpu_custom_call.1} parent=1 // pred_fallthru
      _
    // Predicated region
    $region30: #{tpu_custom_call.1} parent=1 // pred_check
      _
    $region31: #{tpu_custom_call.1} parent=1 // pred_check_branch
      %89 = sbr.rel (0) target = $region33
    $region32: #{tpu_custom_call.1} parent=1 // pred_region
      %91 = dma.done [#allocation5], 1024
    $region33: #{tpu_custom_call.1} parent=1 // pred_fallthru
      _
    // Predicated region
    $region34: #{tpu_custom_call.1} parent=1 // pred_check
      _
    $region35: #{tpu_custom_call.1} parent=1 // pred_check_branch
      %93 = sbr.rel (0) target = $region37
    $region36: #{tpu_custom_call.1} parent=1 // pred_region
      %95 = dma.done [#allocation8], 512
    $region37: #{tpu_custom_call.1} parent=1 // pred_fallthru
      _
    // Predicated region
    $region38: #{tpu_custom_call.1} parent=1 // pred_check
      _
    $region39: #{tpu_custom_call.1} parent=1 // pred_check_branch
      %97 = sbr.rel (0) target = $region41
    $region40: #{tpu_custom_call.1} parent=1 // pred_region
      %99 = dma.done [#allocation8], 512
    $region41: #{tpu_custom_call.1} parent=1 // pred_fallthru
      _
    // Predicated region
    $region42: #{tpu_custom_call.1} parent=1 // pred_check
      _
    $region43: #{tpu_custom_call.1} parent=1 // pred_check_branch
      %101 = sbr.rel (0) target = $region45
    $region44: #{tpu_custom_call.1} parent=1 // pred_region
      %103 = dma.done [#allocation11], 512
    $region45: #{tpu_custom_call.1} parent=1 // pred_fallthru
      _
    // Predicated region
    $region46: #{tpu_custom_call.1} parent=1 // pred_check
      _
    $region47: #{tpu_custom_call.1} parent=1 // pred_check_branch
      %105 = sbr.rel (0) target = $region49
    $region48: #{tpu_custom_call.1} parent=1 // pred_region
      %107 = dma.done [#allocation11], 512
    $region49: #{tpu_custom_call.1} parent=1 // pred_fallthru
      _
    %v108 = vld [vmem:[#allocation4] sm:$0xff]
    %v109 = vld [vmem:[#allocation4 + $0x8] sm:$0xff]
    %v110 = vld [vmem:[#allocation4 + $0x10] sm:$0xff]
    %v111 = vld [vmem:[#allocation4 + $0x18] sm:$0xff]
    %v112 = vld [vmem:[#allocation4 + $0x20] sm:$0xff]
    %v113 = vld [vmem:[#allocation4 + $0x28] sm:$0xff]
    %v114 = vld [vmem:[#allocation4 + $0x30] sm:$0xff]
    %v115 = vld [vmem:[#allocation4 + $0x38] sm:$0xff]
    %v116 = vld [vmem:[#allocation7] sm:$0xff]
    %v117 = vld [vmem:[#allocation7 + $0x8] sm:$0xff]
    %v118 = vld [vmem:[#allocation7 + $0x10] sm:$0xff]
    %v119 = vld [vmem:[#allocation7 + $0x18] sm:$0xff]
    %v120 = vld [vmem:[%s3] sm:$0x1]
    %v122 = vperm.slane %v120, 0
    %vm124 = vcmask 261120
    %v126 = vsel %vm124, %v108, 0
    %v129 = vsel %vm124, %v109, 0
    %v132 = vsel %vm124, %v110, 0
    %v135 = vsel %vm124, %v111, 0
    %v138 = vsel %vm124, %v112, 0
    %v141 = vsel %vm124, %v113, 0
    %v144 = vsel %vm124, %v114, 0
    %v147 = vsel %vm124, %v115, 0
    %149 = vmatpush.msra.mxu0 0.0
    %150 = vmatpush.msra.mxu0 0.0
    %151 = vmatpush.msra.mxu0 0.0
    %152 = vmatpush.msra.mxu0 0.0
    %153 = vmatpush.msra.mxu0 0.0
    %154 = vmatpush.msra.mxu0 0.0
    %155 = vmatpush.msra.mxu0 0.0
    %156 = vmatpush.msra.mxu0 0.0
    %157 = vmatpush.msra.mxu0 0.0
    %158 = vmatpush.msra.mxu0 0.0
    %159 = vmatpush.msra.mxu0 0.0
    %160 = vmatpush.msra.mxu0 0.0
    %161 = vmatpush.msra.mxu0 %v119
    %162 = vmatpush.msra.mxu0 %v118
    %163 = vmatpush.msra.mxu0 %v117
    %164 = vmatpush.msra.mxu0 %v116
    %165 = vmatmul.f32.gmra.mxu0 %v126
    %v166 = vpop.f32.mrf.mxu0
    %v167 = vadd.f32 %v122, %v166
    %168 = vmatmul.f32.gmra.mxu0 %v129
    %v169 = vpop.f32.mrf.mxu0
    %v170 = vadd.f32 %v122, %v169
    %171 = vmatmul.f32.gmra.mxu0 %v132
    %v172 = vpop.f32.mrf.mxu0
    %v173 = vadd.f32 %v122, %v172
    %174 = vmatmul.f32.gmra.mxu0 %v135
    %v175 = vpop.f32.mrf.mxu0
    %v176 = vadd.f32 %v122, %v175
    %177 = vmatmul.f32.gmra.mxu0 %v138
    %v178 = vpop.f32.mrf.mxu0
    %v179 = vadd.f32 %v122, %v178
    %180 = vmatmul.f32.gmra.mxu0 %v141
    %v181 = vpop.f32.mrf.mxu0
    %v182 = vadd.f32 %v122, %v181
    %183 = vmatmul.f32.gmra.mxu0 %v144
    %v184 = vpop.f32.mrf.mxu0
    %v185 = vadd.f32 %v122, %v184
    %186 = vmatmul.f32.gmra.mxu0 %v147
    %v187 = vpop.f32.mrf.mxu0
    %v188 = vadd.f32 %v122, %v187
    %189 = vdwg.mxu0
    %190 = vst [vmem:[#allocation2] sm:$0xff] %v167
    %191 = vst [vmem:[#allocation2 + $0x8] sm:$0xff] %v170
    %192 = vst [vmem:[#allocation2 + $0x10] sm:$0xff] %v173
    %193 = vst [vmem:[#allocation2 + $0x18] sm:$0xff] %v176
    %194 = vst [vmem:[#allocation2 + $0x20] sm:$0xff] %v179
    %195 = vst [vmem:[#allocation2 + $0x28] sm:$0xff] %v182
    %196 = vst [vmem:[#allocation2 + $0x30] sm:$0xff] %v185
    %197 = vst [vmem:[#allocation2 + $0x38] sm:$0xff] %v188
    %v198 = vld [vmem:[#allocation9] sm:$0xff]
    %v199 = vld [vmem:[#allocation9 + $0x8] sm:$0xff]
    %v200 = vld [vmem:[#allocation9 + $0x10] sm:$0xff]
    %v201 = vld [vmem:[#allocation9 + $0x18] sm:$0xff]
    %v202 = vld [vmem:[#allocation2] sm:$0xff]
    %v204 = vsel %vm124, 0.0, 0
    %206 = vmatpush.msra.mxu0 0.0
    %207 = vmatpush.msra.mxu0 0.0
    %208 = vmatpush.msra.mxu0 0.0
    %209 = vmatpush.msra.mxu0 0.0
    %210 = vmatpush.msra.mxu0 0.0
    %211 = vmatpush.msra.mxu0 0.0
    %212 = vmatpush.msra.mxu0 0.0
    %213 = vmatpush.msra.mxu0 0.0
    %214 = vmatpush.msra.mxu0 0.0
    %215 = vmatpush.msra.mxu0 0.0
    %216 = vmatpush.msra.mxu0 0.0
    %217 = vmatpush.msra.mxu0 0.0
    %218 = vmatpush.msra.mxu0 %v201
    %219 = vmatpush.msra.mxu0 %v200
    %220 = vmatpush.msra.mxu0 %v199
    %221 = vmatpush.msra.mxu0 %v198
    %222 = vmatmul.f32.gmra.mxu0 %v204
    %v223 = vpop.f32.mrf.mxu0
    %v224 = vadd.f32 0.0, %v223
    %225 = vdwg.mxu0
    %v226 = vadd.f32 %v202, %v224
    %v227 = vxor.u32 %v226, 2147483648
    %v228 = vmul.f32 %v227, 1.442695
    %v229 = vpow.pop %v228
    %v230 = vadd.f32 %v229, 1.0
    %v231 = vrcp.pop %v230
    %v232 = vmul.f32 %v230, %v231
    %v233 = vsub.f32 1.0, %v232
    %v234 = vmul.f32 %v231, %v233
    %v235 = vadd.f32 %v231, %v234
    %vm236 = vweird.f32 %v230
    %vm237 = vweird.f32 %v231
    %vm238 = vmor %vm236, %vm237
    %v239 = vsel %vm238, %v231, %v235
    %v240 = vand.u32 2147483647, %v230
    %vm241 = vcmp.eq.f32.partialorder %v240, 8.507059e+37
    %v242 = vand.u32 %v230, 2147483648
    %v243 = vor.u32 1.1754944e-38, %v242
    %v244 = vsel %vm241, %v243, %v239
    %v245 = vmul.f32 1.0, %v244
    %v246 = vtanh.pop %v226
    %v247 = vmul.f32 %v245, 0.0
    %249 = vrot.lane.b32.xlu0 %v246, 32
    %v250 = vpop.permute.xlu0 %249
    %v252 = vmul.f32 %v245, %v250
    %254 = vrot.lane.b32.xlu0 %v252, 32
    %v255 = vpop.permute.xlu0 %254
    %v257 = vadd.f32 %v247, %v255
    %v258 = vtanh.pop %v257
    %260 = vrot.lane.b32.xlu0 %v258, 32
    %v261 = vpop.permute.xlu0 %260
    %v263 = vmul.f32 %v245, %v261
    %265 = vrot.lane.b32.xlu0 %v263, 64
    %v266 = vpop.permute.xlu0 %265
    %268 = vst.msk [vmem:[#allocation3] sm:$0xff] %vm124, %v266
    %s269 = scalar_lea.vmem [#allocation2], 8
    %v270 = vld [vmem:[%s269] sm:$0xff]
    %v271 = vsel %vm124, %v266, 0
    %273 = vmatpush.msra.mxu0 0.0
    %274 = vmatpush.msra.mxu0 0.0
    %275 = vmatpush.msra.mxu0 0.0
    %276 = vmatpush.msra.mxu0 0.0
    %277 = vmatpush.msra.mxu0 0.0
    %278 = vmatpush.msra.mxu0 0.0
    %279 = vmatpush.msra.mxu0 0.0
    %280 = vmatpush.msra.mxu0 0.0
    %281 = vmatpush.msra.mxu0 0.0
    %282 = vmatpush.msra.mxu0 0.0
    %283 = vmatpush.msra.mxu0 0.0
    %284 = vmatpush.msra.mxu0 0.0
    %285 = vmatpush.msra.mxu0 %v201
    %286 = vmatpush.msra.mxu0 %v200
    %287 = vmatpush.msra.mxu0 %v199
    %288 = vmatpush.msra.mxu0 %v198
    %289 = vmatmul.f32.gmra.mxu0 %v271
    %v290 = vpop.f32.mrf.mxu0
    %v291 = vadd.f32 0.0, %v290
    %292 = vdwg.mxu0
    %v293 = vadd.f32 %v270, %v291
    %v294 = vxor.u32 %v293, 2147483648
    %v295 = vmul.f32 %v294, 1.442695
    %v296 = vpow.pop %v295
    %v297 = vadd.f32 %v296, 1.0
    %v298 = vrcp.pop %v297
    %v299 = vmul.f32 %v297, %v298
    %v300 = vsub.f32 1.0, %v299
    %v301 = vmul.f32 %v298, %v300
    %v302 = vadd.f32 %v298, %v301
    %vm303 = vweird.f32 %v297
    %vm304 = vweird.f32 %v298
    %vm305 = vmor %vm303, %vm304
    %v306 = vsel %vm305, %v298, %v302
    %v307 = vand.u32 2147483647, %v297
    %vm308 = vcmp.eq.f32.partialorder %v307, 8.507059e+37
    %v309 = vand.u32 %v297, 2147483648
    %v310 = vor.u32 1.1754944e-38, %v309
    %v311 = vsel %vm308, %v310, %v306
    %v312 = vmul.f32 1.0, %v311
    %v313 = vtanh.pop %v293
    %v314 = vmul.f32 %v312, %v257
    %316 = vrot.lane.b32.xlu0 %v313, 32
    %v317 = vpop.permute.xlu0 %316
    %v319 = vmul.f32 %v312, %v317
    %321 = vrot.lane.b32.xlu0 %v319, 32
    %v322 = vpop.permute.xlu0 %321
    %v324 = vadd.f32 %v314, %v322
    %v325 = vtanh.pop %v324
    %327 = vrot.lane.b32.xlu0 %v325, 32
    %v328 = vpop.permute.xlu0 %327
    %v330 = vmul.f32 %v312, %v328
    %332 = vrot.lane.b32.xlu0 %v330, 64
    %v333 = vpop.permute.xlu0 %332
    %s335 = scalar_lea.vmem [#allocation3], 8
    %336 = vst.msk [vmem:[%s335] sm:$0xff] %vm124, %v333
    %s337 = scalar_lea.vmem [#allocation2], 16
    %v338 = vld [vmem:[%s337] sm:$0xff]
    %v339 = vsel %vm124, %v333, 0
    %341 = vmatpush.msra.mxu0 0.0
    %342 = vmatpush.msra.mxu0 0.0
    %343 = vmatpush.msra.mxu0 0.0
    %344 = vmatpush.msra.mxu0 0.0
    %345 = vmatpush.msra.mxu0 0.0
    %346 = vmatpush.msra.mxu0 0.0
    %347 = vmatpush.msra.mxu0 0.0
    %348 = vmatpush.msra.mxu0 0.0
    %349 = vmatpush.msra.mxu0 0.0
    %350 = vmatpush.msra.mxu0 0.0
    %351 = vmatpush.msra.mxu0 0.0
    %352 = vmatpush.msra.mxu0 0.0
    %353 = vmatpush.msra.mxu0 %v201
    %354 = vmatpush.msra.mxu0 %v200
    %355 = vmatpush.msra.mxu0 %v199
    %356 = vmatpush.msra.mxu0 %v198
    %357 = vmatmul.f32.gmra.mxu0 %v339
    %v358 = vpop.f32.mrf.mxu0
    %v359 = vadd.f32 0.0, %v358
    %360 = vdwg.mxu0
    %v361 = vadd.f32 %v338, %v359
    %v362 = vxor.u32 %v361, 2147483648
    %v363 = vmul.f32 %v362, 1.442695
    %v364 = vpow.pop %v363
    %v365 = vadd.f32 %v364, 1.0
    %v366 = vrcp.pop %v365
    %v367 = vmul.f32 %v365, %v366
    %v368 = vsub.f32 1.0, %v367
    %v369 = vmul.f32 %v366, %v368
    %v370 = vadd.f32 %v366, %v369
    %vm371 = vweird.f32 %v365
    %vm372 = vweird.f32 %v366
    %vm373 = vmor %vm371, %vm372
    %v374 = vsel %vm373, %v366, %v370
    %v375 = vand.u32 2147483647, %v365
    %vm376 = vcmp.eq.f32.partialorder %v375, 8.507059e+37
    %v377 = vand.u32 %v365, 2147483648
    %v378 = vor.u32 1.1754944e-38, %v377
    %v379 = vsel %vm376, %v378, %v374
    %v380 = vmul.f32 1.0, %v379
    %v381 = vtanh.pop %v361
    %v382 = vmul.f32 %v380, %v324
    %384 = vrot.lane.b32.xlu0 %v381, 32
    %v385 = vpop.permute.xlu0 %384
    %v387 = vmul.f32 %v380, %v385
    %389 = vrot.lane.b32.xlu0 %v387, 32
    %v390 = vpop.permute.xlu0 %389
    %v392 = vadd.f32 %v382, %v390
    %v393 = vtanh.pop %v392
    %395 = vrot.lane.b32.xlu0 %v393, 32
    %v396 = vpop.permute.xlu0 %395
    %v398 = vmul.f32 %v380, %v396
    %400 = vrot.lane.b32.xlu0 %v398, 64
    %v401 = vpop.permute.xlu0 %400
    %s403 = scalar_lea.vmem [#allocation3], 16
    %404 = vst.msk [vmem:[%s403] sm:$0xff] %vm124, %v401
    %s405 = scalar_lea.vmem [#allocation2], 24
    %v406 = vld [vmem:[%s405] sm:$0xff]
    %v407 = vsel %vm124, %v401, 0
    %409 = vmatpush.msra.mxu0 0.0
    %410 = vmatpush.msra.mxu0 0.0
    %411 = vmatpush.msra.mxu0 0.0
    %412 = vmatpush.msra.mxu0 0.0
    %413 = vmatpush.msra.mxu0 0.0
    %414 = vmatpush.msra.mxu0 0.0
    %415 = vmatpush.msra.mxu0 0.0
    %416 = vmatpush.msra.mxu0 0.0
    %417 = vmatpush.msra.mxu0 0.0
    %418 = vmatpush.msra.mxu0 0.0
    %419 = vmatpush.msra.mxu0 0.0
    %420 = vmatpush.msra.mxu0 0.0
    %421 = vmatpush.msra.mxu0 %v201
    %422 = vmatpush.msra.mxu0 %v200
    %423 = vmatpush.msra.mxu0 %v199
    %424 = vmatpush.msra.mxu0 %v198
    %425 = vmatmul.f32.gmra.mxu0 %v407
    %v426 = vpop.f32.mrf.mxu0
    %v427 = vadd.f32 0.0, %v426
    %428 = vdwg.mxu0
    %v429 = vadd.f32 %v406, %v427
    %v430 = vxor.u32 %v429, 2147483648
    %v431 = vmul.f32 %v430, 1.442695
    %v432 = vpow.pop %v431
    %v433 = vadd.f32 %v432, 1.0
    %v434 = vrcp.pop %v433
    %v435 = vmul.f32 %v433, %v434
    %v436 = vsub.f32 1.0, %v435
    %v437 = vmul.f32 %v434, %v436
    %v438 = vadd.f32 %v434, %v437
    %vm439 = vweird.f32 %v433
    %vm440 = vweird.f32 %v434
    %vm441 = vmor %vm439, %vm440
    %v442 = vsel %vm441, %v434, %v438
    %v443 = vand.u32 2147483647, %v433
    %vm444 = vcmp.eq.f32.partialorder %v443, 8.507059e+37
    %v445 = vand.u32 %v433, 2147483648
    %v446 = vor.u32 1.1754944e-38, %v445
    %v447 = vsel %vm444, %v446, %v442
    %v448 = vmul.f32 1.0, %v447
    %v449 = vtanh.pop %v429
    %v450 = vmul.f32 %v448, %v392
    %452 = vrot.lane.b32.xlu0 %v449, 32
    %v453 = vpop.permute.xlu0 %452
    %v455 = vmul.f32 %v448, %v453
    %457 = vrot.lane.b32.xlu0 %v455, 32
    %v458 = vpop.permute.xlu0 %457
    %v460 = vadd.f32 %v450, %v458
    %v461 = vtanh.pop %v460
    %463 = vrot.lane.b32.xlu0 %v461, 32
    %v464 = vpop.permute.xlu0 %463
    %v466 = vmul.f32 %v448, %v464
    %468 = vrot.lane.b32.xlu0 %v466, 64
    %v469 = vpop.permute.xlu0 %468
    %s471 = scalar_lea.vmem [#allocation3], 24
    %472 = vst.msk [vmem:[%s471] sm:$0xff] %vm124, %v469
    %s473 = scalar_lea.vmem [#allocation2], 32
    %v474 = vld [vmem:[%s473] sm:$0xff]
    %v475 = vsel %vm124, %v469, 0
    %477 = vmatpush.msra.mxu0 0.0
    %478 = vmatpush.msra.mxu0 0.0
    %479 = vmatpush.msra.mxu0 0.0
    %480 = vmatpush.msra.mxu0 0.0
    %481 = vmatpush.msra.mxu0 0.0
    %482 = vmatpush.msra.mxu0 0.0
    %483 = vmatpush.msra.mxu0 0.0
    %484 = vmatpush.msra.mxu0 0.0
    %485 = vmatpush.msra.mxu0 0.0
    %486 = vmatpush.msra.mxu0 0.0
    %487 = vmatpush.msra.mxu0 0.0
    %488 = vmatpush.msra.mxu0 0.0
    %489 = vmatpush.msra.mxu0 %v201
    %490 = vmatpush.msra.mxu0 %v200
    %491 = vmatpush.msra.mxu0 %v199
    %492 = vmatpush.msra.mxu0 %v198
    %493 = vmatmul.f32.gmra.mxu0 %v475
    %v494 = vpop.f32.mrf.mxu0
    %v495 = vadd.f32 0.0, %v494
    %496 = vdwg.mxu0
    %v497 = vadd.f32 %v474, %v495
    %v498 = vxor.u32 %v497, 2147483648
    %v499 = vmul.f32 %v498, 1.442695
    %v500 = vpow.pop %v499
    %v501 = vadd.f32 %v500, 1.0
    %v502 = vrcp.pop %v501
    %v503 = vmul.f32 %v501, %v502
    %v504 = vsub.f32 1.0, %v503
    %v505 = vmul.f32 %v502, %v504
    %v506 = vadd.f32 %v502, %v505
    %vm507 = vweird.f32 %v501
    %vm508 = vweird.f32 %v502
    %vm509 = vmor %vm507, %vm508
    %v510 = vsel %vm509, %v502, %v506
    %v511 = vand.u32 2147483647, %v501
    %vm512 = vcmp.eq.f32.partialorder %v511, 8.507059e+37
    %v513 = vand.u32 %v501, 2147483648
    %v514 = vor.u32 1.1754944e-38, %v513
    %v515 = vsel %vm512, %v514, %v510
    %v516 = vmul.f32 1.0, %v515
    %v517 = vtanh.pop %v497
    %v518 = vmul.f32 %v516, %v460
    %520 = vrot.lane.b32.xlu0 %v517, 32
    %v521 = vpop.permute.xlu0 %520
    %v523 = vmul.f32 %v516, %v521
    %525 = vrot.lane.b32.xlu0 %v523, 32
    %v526 = vpop.permute.xlu0 %525
    %v528 = vadd.f32 %v518, %v526
    %v529 = vtanh.pop %v528
    %531 = vrot.lane.b32.xlu0 %v529, 32
    %v532 = vpop.permute.xlu0 %531
    %v534 = vmul.f32 %v516, %v532
    %536 = vrot.lane.b32.xlu0 %v534, 64
    %v537 = vpop.permute.xlu0 %536
    %s539 = scalar_lea.vmem [#allocation3], 32
    %540 = vst.msk [vmem:[%s539] sm:$0xff] %vm124, %v537
    %s541 = scalar_lea.vmem [#allocation2], 40
    %v542 = vld [vmem:[%s541] sm:$0xff]
    %v543 = vsel %vm124, %v537, 0
    %545 = vmatpush.msra.mxu0 0.0
    %546 = vmatpush.msra.mxu0 0.0
    %547 = vmatpush.msra.mxu0 0.0
    %548 = vmatpush.msra.mxu0 0.0
    %549 = vmatpush.msra.mxu0 0.0
    %550 = vmatpush.msra.mxu0 0.0
    %551 = vmatpush.msra.mxu0 0.0
    %552 = vmatpush.msra.mxu0 0.0
    %553 = vmatpush.msra.mxu0 0.0
    %554 = vmatpush.msra.mxu0 0.0
    %555 = vmatpush.msra.mxu0 0.0
    %556 = vmatpush.msra.mxu0 0.0
    %557 = vmatpush.msra.mxu0 %v201
    %558 = vmatpush.msra.mxu0 %v200
    %559 = vmatpush.msra.mxu0 %v199
    %560 = vmatpush.msra.mxu0 %v198
    %561 = vmatmul.f32.gmra.mxu0 %v543
    %v562 = vpop.f32.mrf.mxu0
    %v563 = vadd.f32 0.0, %v562
    %564 = vdwg.mxu0
    %v565 = vadd.f32 %v542, %v563
    %v566 = vxor.u32 %v565, 2147483648
    %v567 = vmul.f32 %v566, 1.442695
    %v568 = vpow.pop %v567
    %v569 = vadd.f32 %v568, 1.0
    %v570 = vrcp.pop %v569
    %v571 = vmul.f32 %v569, %v570
    %v572 = vsub.f32 1.0, %v571
    %v573 = vmul.f32 %v570, %v572
    %v574 = vadd.f32 %v570, %v573
    %vm575 = vweird.f32 %v569
    %vm576 = vweird.f32 %v570
    %vm577 = vmor %vm575, %vm576
    %v578 = vsel %vm577, %v570, %v574
    %v579 = vand.u32 2147483647, %v569
    %vm580 = vcmp.eq.f32.partialorder %v579, 8.507059e+37
    %v581 = vand.u32 %v569, 2147483648
    %v582 = vor.u32 1.1754944e-38, %v581
    %v583 = vsel %vm580, %v582, %v578
    %v584 = vmul.f32 1.0, %v583
    %v585 = vtanh.pop %v565
    %v586 = vmul.f32 %v584, %v528
    %588 = vrot.lane.b32.xlu0 %v585, 32
    %v589 = vpop.permute.xlu0 %588
    %v591 = vmul.f32 %v584, %v589
    %593 = vrot.lane.b32.xlu0 %v591, 32
    %v594 = vpop.permute.xlu0 %593
    %v596 = vadd.f32 %v586, %v594
    %v597 = vtanh.pop %v596
    %599 = vrot.lane.b32.xlu0 %v597, 32
    %v600 = vpop.permute.xlu0 %599
    %v602 = vmul.f32 %v584, %v600
    %604 = vrot.lane.b32.xlu0 %v602, 64
    %v605 = vpop.permute.xlu0 %604
    %s607 = scalar_lea.vmem [#allocation3], 40
    %608 = vst.msk [vmem:[%s607] sm:$0xff] %vm124, %v605
    %s609 = scalar_lea.vmem [#allocation2], 48
    %v610 = vld [vmem:[%s609] sm:$0xff]
    %v611 = vsel %vm124, %v605, 0
    %613 = vmatpush.msra.mxu0 0.0
    %614 = vmatpush.msra.mxu0 0.0
    %615 = vmatpush.msra.mxu0 0.0
    %616 = vmatpush.msra.mxu0 0.0
    %617 = vmatpush.msra.mxu0 0.0
    %618 = vmatpush.msra.mxu0 0.0
    %619 = vmatpush.msra.mxu0 0.0
    %620 = vmatpush.msra.mxu0 0.0
    %621 = vmatpush.msra.mxu0 0.0
    %622 = vmatpush.msra.mxu0 0.0
    %623 = vmatpush.msra.mxu0 0.0
    %624 = vmatpush.msra.mxu0 0.0
    %625 = vmatpush.msra.mxu0 %v201
    %626 = vmatpush.msra.mxu0 %v200
    %627 = vmatpush.msra.mxu0 %v199
    %628 = vmatpush.msra.mxu0 %v198
    %629 = vmatmul.f32.gmra.mxu0 %v611
    %v630 = vpop.f32.mrf.mxu0
    %v631 = vadd.f32 0.0, %v630
    %632 = vdwg.mxu0
    %v633 = vadd.f32 %v610, %v631
    %v634 = vxor.u32 %v633, 2147483648
    %v635 = vmul.f32 %v634, 1.442695
    %v636 = vpow.pop %v635
    %v637 = vadd.f32 %v636, 1.0
    %v638 = vrcp.pop %v637
    %v639 = vmul.f32 %v637, %v638
    %v640 = vsub.f32 1.0, %v639
    %v641 = vmul.f32 %v638, %v640
    %v642 = vadd.f32 %v638, %v641
    %vm643 = vweird.f32 %v637
    %vm644 = vweird.f32 %v638
    %vm645 = vmor %vm643, %vm644
    %v646 = vsel %vm645, %v638, %v642
    %v647 = vand.u32 2147483647, %v637
    %vm648 = vcmp.eq.f32.partialorder %v647, 8.507059e+37
    %v649 = vand.u32 %v637, 2147483648
    %v650 = vor.u32 1.1754944e-38, %v649
    %v651 = vsel %vm648, %v650, %v646
    %v652 = vmul.f32 1.0, %v651
    %v653 = vtanh.pop %v633
    %v654 = vmul.f32 %v652, %v596
    %656 = vrot.lane.b32.xlu0 %v653, 32
    %v657 = vpop.permute.xlu0 %656
    %v659 = vmul.f32 %v652, %v657
    %661 = vrot.lane.b32.xlu0 %v659, 32
    %v662 = vpop.permute.xlu0 %661
    %v664 = vadd.f32 %v654, %v662
    %v665 = vtanh.pop %v664
    %667 = vrot.lane.b32.xlu0 %v665, 32
    %v668 = vpop.permute.xlu0 %667
    %v670 = vmul.f32 %v652, %v668
    %672 = vrot.lane.b32.xlu0 %v670, 64
    %v673 = vpop.permute.xlu0 %672
    %s675 = scalar_lea.vmem [#allocation3], 48
    %676 = vst.msk [vmem:[%s675] sm:$0xff] %vm124, %v673
    %s677 = scalar_lea.vmem [#allocation2], 56
    %v678 = vld [vmem:[%s677] sm:$0xff]
    %v679 = vsel %vm124, %v673, 0
    %681 = vmatpush.msra.mxu0 0.0
    %682 = vmatpush.msra.mxu0 0.0
    %683 = vmatpush.msra.mxu0 0.0
    %684 = vmatpush.msra.mxu0 0.0
    %685 = vmatpush.msra.mxu0 0.0
    %686 = vmatpush.msra.mxu0 0.0
    %687 = vmatpush.msra.mxu0 0.0
    %688 = vmatpush.msra.mxu0 0.0
    %689 = vmatpush.msra.mxu0 0.0
    %690 = vmatpush.msra.mxu0 0.0
    %691 = vmatpush.msra.mxu0 0.0
    %692 = vmatpush.msra.mxu0 0.0
    %693 = vmatpush.msra.mxu0 %v201
    %694 = vmatpush.msra.mxu0 %v200
    %695 = vmatpush.msra.mxu0 %v199
    %696 = vmatpush.msra.mxu0 %v198
    %697 = vmatmul.f32.gmra.mxu0 %v679
    %v698 = vpop.f32.mrf.mxu0
    %v699 = vadd.f32 0.0, %v698
    %700 = vdwg.mxu0
    %v701 = vadd.f32 %v678, %v699
    %v702 = vxor.u32 %v701, 2147483648
    %v703 = vmul.f32 %v702, 1.442695
    %v704 = vpow.pop %v703
    %v705 = vadd.f32 %v704, 1.0
    %v706 = vrcp.pop %v705
    %v707 = vmul.f32 %v705, %v706
    %v708 = vsub.f32 1.0, %v707
    %v709 = vmul.f32 %v706, %v708
    %v710 = vadd.f32 %v706, %v709
    %vm711 = vweird.f32 %v705
    %vm712 = vweird.f32 %v706
    %vm713 = vmor %vm711, %vm712
    %v714 = vsel %vm713, %v706, %v710
    %v715 = vand.u32 2147483647, %v705
    %vm716 = vcmp.eq.f32.partialorder %v715, 8.507059e+37
    %v717 = vand.u32 %v705, 2147483648
    %v718 = vor.u32 1.1754944e-38, %v717
    %v719 = vsel %vm716, %v718, %v714
    %v720 = vmul.f32 1.0, %v719
    %v721 = vtanh.pop %v701
    %v722 = vmul.f32 %v720, %v664
    %724 = vrot.lane.b32.xlu0 %v721, 32
    %v725 = vpop.permute.xlu0 %724
    %v727 = vmul.f32 %v720, %v725
    %729 = vrot.lane.b32.xlu0 %v727, 32
    %v730 = vpop.permute.xlu0 %729
    %v732 = vadd.f32 %v722, %v730
    %v733 = vtanh.pop %v732
    %735 = vrot.lane.b32.xlu0 %v733, 32
    %v736 = vpop.permute.xlu0 %735
    %v738 = vmul.f32 %v720, %v736
    %740 = vrot.lane.b32.xlu0 %v738, 64
    %v741 = vpop.permute.xlu0 %740
    %s743 = scalar_lea.vmem [#allocation3], 56
    %744 = vst.msk [vmem:[%s743] sm:$0xff] %vm124, %v741
    %745 = vst.msk [vmem:[#allocation13] sm:$0xff] %vm124, %v741
    %747 = vrot.lane.b32.xlu0 %v732, 96
    %v748 = vpop.permute.xlu0 %747
    %750 = vst.msk [vmem:[#allocation14] sm:$0xff] %vm124, %v748
    %v751 = vld [vmem:[#allocation3] sm:$0xff]
    %v752 = vld [vmem:[#allocation3 + $0x8] sm:$0xff]
    %v753 = vld [vmem:[#allocation3 + $0x10] sm:$0xff]
    %v754 = vld [vmem:[#allocation3 + $0x18] sm:$0xff]
    %v755 = vld [vmem:[#allocation3 + $0x20] sm:$0xff]
    %v756 = vld [vmem:[#allocation3 + $0x28] sm:$0xff]
    %v757 = vld [vmem:[#allocation3 + $0x30] sm:$0xff]
    %v758 = vld [vmem:[#allocation3 + $0x38] sm:$0xff]
    %v759 = vld [vmem:[#allocation10] sm:$0xff]
    %v760 = vld [vmem:[#allocation10 + $0x8] sm:$0xff]
    %v761 = vld [vmem:[#allocation10 + $0x10] sm:$0xff]
    %v762 = vld [vmem:[#allocation10 + $0x18] sm:$0xff]
    %v763 = vld [vmem:[%s6] sm:$0x1]
    %v765 = vperm.slane %v763, 0
    %v768 = vsel %vm124, %v751, 0
    %v771 = vsel %vm124, %v752, 0
    %v774 = vsel %vm124, %v753, 0
    %v777 = vsel %vm124, %v754, 0
    %v780 = vsel %vm124, %v755, 0
    %v783 = vsel %vm124, %v756, 0
    %v786 = vsel %vm124, %v757, 0
    %v789 = vsel %vm124, %v758, 0
    %791 = vmatpush.msra.mxu0 0.0
    %792 = vmatpush.msra.mxu0 0.0
    %793 = vmatpush.msra.mxu0 0.0
    %794 = vmatpush.msra.mxu0 0.0
    %795 = vmatpush.msra.mxu0 0.0
    %796 = vmatpush.msra.mxu0 0.0
    %797 = vmatpush.msra.mxu0 0.0
    %798 = vmatpush.msra.mxu0 0.0
    %799 = vmatpush.msra.mxu0 0.0
    %800 = vmatpush.msra.mxu0 0.0
    %801 = vmatpush.msra.mxu0 0.0
    %802 = vmatpush.msra.mxu0 0.0
    %803 = vmatpush.msra.mxu0 %v762
    %804 = vmatpush.msra.mxu0 %v761
    %805 = vmatpush.msra.mxu0 %v760
    %806 = vmatpush.msra.mxu0 %v759
    %807 = vmatmul.f32.gmra.mxu0 %v768
    %v808 = vpop.f32.mrf.mxu0
    %v809 = vadd.f32 %v765, %v808
    %810 = vmatmul.f32.gmra.mxu0 %v771
    %v811 = vpop.f32.mrf.mxu0
    %v812 = vadd.f32 %v765, %v811
    %813 = vmatmul.f32.gmra.mxu0 %v774
    %v814 = vpop.f32.mrf.mxu0
    %v815 = vadd.f32 %v765, %v814
    %816 = vmatmul.f32.gmra.mxu0 %v777
    %v817 = vpop.f32.mrf.mxu0
    %v818 = vadd.f32 %v765, %v817
    %819 = vmatmul.f32.gmra.mxu0 %v780
    %v820 = vpop.f32.mrf.mxu0
    %v821 = vadd.f32 %v765, %v820
    %822 = vmatmul.f32.gmra.mxu0 %v783
    %v823 = vpop.f32.mrf.mxu0
    %v824 = vadd.f32 %v765, %v823
    %825 = vmatmul.f32.gmra.mxu0 %v786
    %v826 = vpop.f32.mrf.mxu0
    %v827 = vadd.f32 %v765, %v826
    %828 = vmatmul.f32.gmra.mxu0 %v789
    %v829 = vpop.f32.mrf.mxu0
    %v830 = vadd.f32 %v765, %v829
    %831 = vdwg.mxu0
    %832 = vst [vmem:[#allocation2] sm:$0xff] %v809
    %833 = vst [vmem:[#allocation2 + $0x8] sm:$0xff] %v812
    %834 = vst [vmem:[#allocation2 + $0x10] sm:$0xff] %v815
    %835 = vst [vmem:[#allocation2 + $0x18] sm:$0xff] %v818
    %836 = vst [vmem:[#allocation2 + $0x20] sm:$0xff] %v821
    %837 = vst [vmem:[#allocation2 + $0x28] sm:$0xff] %v824
    %838 = vst [vmem:[#allocation2 + $0x30] sm:$0xff] %v827
    %839 = vst [vmem:[#allocation2 + $0x38] sm:$0xff] %v830
    %v840 = vld [vmem:[#allocation12] sm:$0xff]
    %v841 = vld [vmem:[#allocation12 + $0x8] sm:$0xff]
    %v842 = vld [vmem:[#allocation12 + $0x10] sm:$0xff]
    %v843 = vld [vmem:[#allocation12 + $0x18] sm:$0xff]
    %v844 = vld [vmem:[#allocation2] sm:$0xff]
    %845 = vmatpush.msra.mxu0 0.0
    %846 = vmatpush.msra.mxu0 0.0
    %847 = vmatpush.msra.mxu0 0.0
    %848 = vmatpush.msra.mxu0 0.0
    %849 = vmatpush.msra.mxu0 0.0
    %850 = vmatpush.msra.mxu0 0.0
    %851 = vmatpush.msra.mxu0 0.0
    %852 = vmatpush.msra.mxu0 0.0
    %853 = vmatpush.msra.mxu0 0.0
    %854 = vmatpush.msra.mxu0 0.0
    %855 = vmatpush.msra.mxu0 0.0
    %856 = vmatpush.msra.mxu0 0.0
    %857 = vmatpush.msra.mxu0 %v843
    %858 = vmatpush.msra.mxu0 %v842
    %859 = vmatpush.msra.mxu0 %v841
    %860 = vmatpush.msra.mxu0 %v840
    %861 = vmatmul.f32.gmra.mxu0 %v204
    %v862 = vpop.f32.mrf.mxu0
    %v863 = vadd.f32 0.0, %v862
    %864 = vdwg.mxu0
    %v865 = vadd.f32 %v844, %v863
    %v866 = vxor.u32 %v865, 2147483648
    %v867 = vmul.f32 %v866, 1.442695
    %v868 = vpow.pop %v867
    %v869 = vadd.f32 %v868, 1.0
    %v870 = vrcp.pop %v869
    %v871 = vmul.f32 %v869, %v870
    %v872 = vsub.f32 1.0, %v871
    %v873 = vmul.f32 %v870, %v872
    %v874 = vadd.f32 %v870, %v873
    %vm875 = vweird.f32 %v869
    %vm876 = vweird.f32 %v870
    %vm877 = vmor %vm875, %vm876
    %v878 = vsel %vm877, %v870, %v874
    %v879 = vand.u32 2147483647, %v869
    %vm880 = vcmp.eq.f32.partialorder %v879, 8.507059e+37
    %v881 = vand.u32 %v869, 2147483648
    %v882 = vor.u32 1.1754944e-38, %v881
    %v883 = vsel %vm880, %v882, %v878
    %v884 = vmul.f32 1.0, %v883
    %v885 = vtanh.pop %v865
    %v886 = vmul.f32 %v884, 0.0
    %888 = vrot.lane.b32.xlu0 %v885, 32
    %v889 = vpop.permute.xlu0 %888
    %v891 = vmul.f32 %v884, %v889
    %893 = vrot.lane.b32.xlu0 %v891, 32
    %v894 = vpop.permute.xlu0 %893
    %v896 = vadd.f32 %v886, %v894
    %v897 = vtanh.pop %v896
    %899 = vrot.lane.b32.xlu0 %v897, 32
    %v900 = vpop.permute.xlu0 %899
    %v902 = vmul.f32 %v884, %v900
    %v903 = vld [vmem:[%s269] sm:$0xff]
    %905 = vrot.lane.b32.xlu0 %v902, 64
    %v906 = vpop.permute.xlu0 %905
    %v907 = vsel %vm124, %v906, 0
    %909 = vmatpush.msra.mxu0 0.0
    %910 = vmatpush.msra.mxu0 0.0
    %911 = vmatpush.msra.mxu0 0.0
    %912 = vmatpush.msra.mxu0 0.0
    %913 = vmatpush.msra.mxu0 0.0
    %914 = vmatpush.msra.mxu0 0.0
    %915 = vmatpush.msra.mxu0 0.0
    %916 = vmatpush.msra.mxu0 0.0
    %917 = vmatpush.msra.mxu0 0.0
    %918 = vmatpush.msra.mxu0 0.0
    %919 = vmatpush.msra.mxu0 0.0
    %920 = vmatpush.msra.mxu0 0.0
    %921 = vmatpush.msra.mxu0 %v843
    %922 = vmatpush.msra.mxu0 %v842
    %923 = vmatpush.msra.mxu0 %v841
    %924 = vmatpush.msra.mxu0 %v840
    %925 = vmatmul.f32.gmra.mxu0 %v907
    %v926 = vpop.f32.mrf.mxu0
    %v927 = vadd.f32 0.0, %v926
    %928 = vdwg.mxu0
    %v929 = vadd.f32 %v903, %v927
    %v930 = vxor.u32 %v929, 2147483648
    %v931 = vmul.f32 %v930, 1.442695
    %v932 = vpow.pop %v931
    %v933 = vadd.f32 %v932, 1.0
    %v934 = vrcp.pop %v933
    %v935 = vmul.f32 %v933, %v934
    %v936 = vsub.f32 1.0, %v935
    %v937 = vmul.f32 %v934, %v936
    %v938 = vadd.f32 %v934, %v937
    %vm939 = vweird.f32 %v933
    %vm940 = vweird.f32 %v934
    %vm941 = vmor %vm939, %vm940
    %v942 = vsel %vm941, %v934, %v938
    %v943 = vand.u32 2147483647, %v933
    %vm944 = vcmp.eq.f32.partialorder %v943, 8.507059e+37
    %v945 = vand.u32 %v933, 2147483648
    %v946 = vor.u32 1.1754944e-38, %v945
    %v947 = vsel %vm944, %v946, %v942
    %v948 = vmul.f32 1.0, %v947
    %v949 = vtanh.pop %v929
    %v950 = vmul.f32 %v948, %v896
    %952 = vrot.lane.b32.xlu0 %v949, 32
    %v953 = vpop.permute.xlu0 %952
    %v955 = vmul.f32 %v948, %v953
    %957 = vrot.lane.b32.xlu0 %v955, 32
    %v958 = vpop.permute.xlu0 %957
    %v960 = vadd.f32 %v950, %v958
    %v961 = vtanh.pop %v960
    %963 = vrot.lane.b32.xlu0 %v961, 32
    %v964 = vpop.permute.xlu0 %963
    %v966 = vmul.f32 %v948, %v964
    %v967 = vld [vmem:[%s337] sm:$0xff]
    %969 = vrot.lane.b32.xlu0 %v966, 64
    %v970 = vpop.permute.xlu0 %969
    %v971 = vsel %vm124, %v970, 0
    %973 = vmatpush.msra.mxu0 0.0
    %974 = vmatpush.msra.mxu0 0.0
    %975 = vmatpush.msra.mxu0 0.0
    %976 = vmatpush.msra.mxu0 0.0
    %977 = vmatpush.msra.mxu0 0.0
    %978 = vmatpush.msra.mxu0 0.0
    %979 = vmatpush.msra.mxu0 0.0
    %980 = vmatpush.msra.mxu0 0.0
    %981 = vmatpush.msra.mxu0 0.0
    %982 = vmatpush.msra.mxu0 0.0
    %983 = vmatpush.msra.mxu0 0.0
    %984 = vmatpush.msra.mxu0 0.0
    %985 = vmatpush.msra.mxu0 %v843
    %986 = vmatpush.msra.mxu0 %v842
    %987 = vmatpush.msra.mxu0 %v841
    %988 = vmatpush.msra.mxu0 %v840
    %989 = vmatmul.f32.gmra.mxu0 %v971
    %v990 = vpop.f32.mrf.mxu0
    %v991 = vadd.f32 0.0, %v990
    %992 = vdwg.mxu0
    %v993 = vadd.f32 %v967, %v991
    %v994 = vxor.u32 %v993, 2147483648
    %v995 = vmul.f32 %v994, 1.442695
    %v996 = vpow.pop %v995
    %v997 = vadd.f32 %v996, 1.0
    %v998 = vrcp.pop %v997
    %v999 = vmul.f32 %v997, %v998
    %v1000 = vsub.f32 1.0, %v999
    %v1001 = vmul.f32 %v998, %v1000
    %v1002 = vadd.f32 %v998, %v1001
    %vm1003 = vweird.f32 %v997
    %vm1004 = vweird.f32 %v998
    %vm1005 = vmor %vm1003, %vm1004
    %v1006 = vsel %vm1005, %v998, %v1002
    %v1007 = vand.u32 2147483647, %v997
    %vm1008 = vcmp.eq.f32.partialorder %v1007, 8.507059e+37
    %v1009 = vand.u32 %v997, 2147483648
    %v1010 = vor.u32 1.1754944e-38, %v1009
    %v1011 = vsel %vm1008, %v1010, %v1006
    %v1012 = vmul.f32 1.0, %v1011
    %v1013 = vtanh.pop %v993
    %v1014 = vmul.f32 %v1012, %v960
    %1016 = vrot.lane.b32.xlu0 %v1013, 32
    %v1017 = vpop.permute.xlu0 %1016
    %v1019 = vmul.f32 %v1012, %v1017
    %1021 = vrot.lane.b32.xlu0 %v1019, 32
    %v1022 = vpop.permute.xlu0 %1021
    %v1024 = vadd.f32 %v1014, %v1022
    %v1025 = vtanh.pop %v1024
    %1027 = vrot.lane.b32.xlu0 %v1025, 32
    %v1028 = vpop.permute.xlu0 %1027
    %v1030 = vmul.f32 %v1012, %v1028
    %v1031 = vld [vmem:[%s405] sm:$0xff]
    %1033 = vrot.lane.b32.xlu0 %v1030, 64
    %v1034 = vpop.permute.xlu0 %1033
    %v1035 = vsel %vm124, %v1034, 0
    %1037 = vmatpush.msra.mxu0 0.0
    %1038 = vmatpush.msra.mxu0 0.0
    %1039 = vmatpush.msra.mxu0 0.0
    %1040 = vmatpush.msra.mxu0 0.0
    %1041 = vmatpush.msra.mxu0 0.0
    %1042 = vmatpush.msra.mxu0 0.0
    %1043 = vmatpush.msra.mxu0 0.0
    %1044 = vmatpush.msra.mxu0 0.0
    %1045 = vmatpush.msra.mxu0 0.0
    %1046 = vmatpush.msra.mxu0 0.0
    %1047 = vmatpush.msra.mxu0 0.0
    %1048 = vmatpush.msra.mxu0 0.0
    %1049 = vmatpush.msra.mxu0 %v843
    %1050 = vmatpush.msra.mxu0 %v842
    %1051 = vmatpush.msra.mxu0 %v841
    %1052 = vmatpush.msra.mxu0 %v840
    %1053 = vmatmul.f32.gmra.mxu0 %v1035
    %v1054 = vpop.f32.mrf.mxu0
    %v1055 = vadd.f32 0.0, %v1054
    %1056 = vdwg.mxu0
    %v1057 = vadd.f32 %v1031, %v1055
    %v1058 = vxor.u32 %v1057, 2147483648
    %v1059 = vmul.f32 %v1058, 1.442695
    %v1060 = vpow.pop %v1059
    %v1061 = vadd.f32 %v1060, 1.0
    %v1062 = vrcp.pop %v1061
    %v1063 = vmul.f32 %v1061, %v1062
    %v1064 = vsub.f32 1.0, %v1063
    %v1065 = vmul.f32 %v1062, %v1064
    %v1066 = vadd.f32 %v1062, %v1065
    %vm1067 = vweird.f32 %v1061
    %vm1068 = vweird.f32 %v1062
    %vm1069 = vmor %vm1067, %vm1068
    %v1070 = vsel %vm1069, %v1062, %v1066
    %v1071 = vand.u32 2147483647, %v1061
    %vm1072 = vcmp.eq.f32.partialorder %v1071, 8.507059e+37
    %v1073 = vand.u32 %v1061, 2147483648
    %v1074 = vor.u32 1.1754944e-38, %v1073
    %v1075 = vsel %vm1072, %v1074, %v1070
    %v1076 = vmul.f32 1.0, %v1075
    %v1077 = vtanh.pop %v1057
    %v1078 = vmul.f32 %v1076, %v1024
    %1080 = vrot.lane.b32.xlu0 %v1077, 32
    %v1081 = vpop.permute.xlu0 %1080
    %v1083 = vmul.f32 %v1076, %v1081
    %1085 = vrot.lane.b32.xlu0 %v1083, 32
    %v1086 = vpop.permute.xlu0 %1085
    %v1088 = vadd.f32 %v1078, %v1086
    %v1089 = vtanh.pop %v1088
    %1091 = vrot.lane.b32.xlu0 %v1089, 32
    %v1092 = vpop.permute.xlu0 %1091
    %v1094 = vmul.f32 %v1076, %v1092
    %v1095 = vld [vmem:[%s473] sm:$0xff]
    %1097 = vrot.lane.b32.xlu0 %v1094, 64
    %v1098 = vpop.permute.xlu0 %1097
    %v1099 = vsel %vm124, %v1098, 0
    %1101 = vmatpush.msra.mxu0 0.0
    %1102 = vmatpush.msra.mxu0 0.0
    %1103 = vmatpush.msra.mxu0 0.0
    %1104 = vmatpush.msra.mxu0 0.0
    %1105 = vmatpush.msra.mxu0 0.0
    %1106 = vmatpush.msra.mxu0 0.0
    %1107 = vmatpush.msra.mxu0 0.0
    %1108 = vmatpush.msra.mxu0 0.0
    %1109 = vmatpush.msra.mxu0 0.0
    %1110 = vmatpush.msra.mxu0 0.0
    %1111 = vmatpush.msra.mxu0 0.0
    %1112 = vmatpush.msra.mxu0 0.0
    %1113 = vmatpush.msra.mxu0 %v843
    %1114 = vmatpush.msra.mxu0 %v842
    %1115 = vmatpush.msra.mxu0 %v841
    %1116 = vmatpush.msra.mxu0 %v840
    %1117 = vmatmul.f32.gmra.mxu0 %v1099
    %v1118 = vpop.f32.mrf.mxu0
    %v1119 = vadd.f32 0.0, %v1118
    %1120 = vdwg.mxu0
    %v1121 = vadd.f32 %v1095, %v1119
    %v1122 = vxor.u32 %v1121, 2147483648
    %v1123 = vmul.f32 %v1122, 1.442695
    %v1124 = vpow.pop %v1123
    %v1125 = vadd.f32 %v1124, 1.0
    %v1126 = vrcp.pop %v1125
    %v1127 = vmul.f32 %v1125, %v1126
    %v1128 = vsub.f32 1.0, %v1127
    %v1129 = vmul.f32 %v1126, %v1128
    %v1130 = vadd.f32 %v1126, %v1129
    %vm1131 = vweird.f32 %v1125
    %vm1132 = vweird.f32 %v1126
    %vm1133 = vmor %vm1131, %vm1132
    %v1134 = vsel %vm1133, %v1126, %v1130
    %v1135 = vand.u32 2147483647, %v1125
    %vm1136 = vcmp.eq.f32.partialorder %v1135, 8.507059e+37
    %v1137 = vand.u32 %v1125, 2147483648
    %v1138 = vor.u32 1.1754944e-38, %v1137
    %v1139 = vsel %vm1136, %v1138, %v1134
    %v1140 = vmul.f32 1.0, %v1139
    %v1141 = vtanh.pop %v1121
    %v1142 = vmul.f32 %v1140, %v1088
    %1144 = vrot.lane.b32.xlu0 %v1141, 32
    %v1145 = vpop.permute.xlu0 %1144
    %v1147 = vmul.f32 %v1140, %v1145
    %1149 = vrot.lane.b32.xlu0 %v1147, 32
    %v1150 = vpop.permute.xlu0 %1149
    %v1152 = vadd.f32 %v1142, %v1150
    %v1153 = vtanh.pop %v1152
    %1155 = vrot.lane.b32.xlu0 %v1153, 32
    %v1156 = vpop.permute.xlu0 %1155
    %v1158 = vmul.f32 %v1140, %v1156
    %v1159 = vld [vmem:[%s541] sm:$0xff]
    %1161 = vrot.lane.b32.xlu0 %v1158, 64
    %v1162 = vpop.permute.xlu0 %1161
    %v1163 = vsel %vm124, %v1162, 0
    %1165 = vmatpush.msra.mxu0 0.0
    %1166 = vmatpush.msra.mxu0 0.0
    %1167 = vmatpush.msra.mxu0 0.0
    %1168 = vmatpush.msra.mxu0 0.0
    %1169 = vmatpush.msra.mxu0 0.0
    %1170 = vmatpush.msra.mxu0 0.0
    %1171 = vmatpush.msra.mxu0 0.0
    %1172 = vmatpush.msra.mxu0 0.0
    %1173 = vmatpush.msra.mxu0 0.0
    %1174 = vmatpush.msra.mxu0 0.0
    %1175 = vmatpush.msra.mxu0 0.0
    %1176 = vmatpush.msra.mxu0 0.0
    %1177 = vmatpush.msra.mxu0 %v843
    %1178 = vmatpush.msra.mxu0 %v842
    %1179 = vmatpush.msra.mxu0 %v841
    %1180 = vmatpush.msra.mxu0 %v840
    %1181 = vmatmul.f32.gmra.mxu0 %v1163
    %v1182 = vpop.f32.mrf.mxu0
    %v1183 = vadd.f32 0.0, %v1182
    %1184 = vdwg.mxu0
    %v1185 = vadd.f32 %v1159, %v1183
    %v1186 = vxor.u32 %v1185, 2147483648
    %v1187 = vmul.f32 %v1186, 1.442695
    %v1188 = vpow.pop %v1187
    %v1189 = vadd.f32 %v1188, 1.0
    %v1190 = vrcp.pop %v1189
    %v1191 = vmul.f32 %v1189, %v1190
    %v1192 = vsub.f32 1.0, %v1191
    %v1193 = vmul.f32 %v1190, %v1192
    %v1194 = vadd.f32 %v1190, %v1193
    %vm1195 = vweird.f32 %v1189
    %vm1196 = vweird.f32 %v1190
    %vm1197 = vmor %vm1195, %vm1196
    %v1198 = vsel %vm1197, %v1190, %v1194
    %v1199 = vand.u32 2147483647, %v1189
    %vm1200 = vcmp.eq.f32.partialorder %v1199, 8.507059e+37
    %v1201 = vand.u32 %v1189, 2147483648
    %v1202 = vor.u32 1.1754944e-38, %v1201
    %v1203 = vsel %vm1200, %v1202, %v1198
    %v1204 = vmul.f32 1.0, %v1203
    %v1205 = vtanh.pop %v1185
    %v1206 = vmul.f32 %v1204, %v1152
    %1208 = vrot.lane.b32.xlu0 %v1205, 32
    %v1209 = vpop.permute.xlu0 %1208
    %v1211 = vmul.f32 %v1204, %v1209
    %1213 = vrot.lane.b32.xlu0 %v1211, 32
    %v1214 = vpop.permute.xlu0 %1213
    %v1216 = vadd.f32 %v1206, %v1214
    %v1217 = vtanh.pop %v1216
    %1219 = vrot.lane.b32.xlu0 %v1217, 32
    %v1220 = vpop.permute.xlu0 %1219
    %v1222 = vmul.f32 %v1204, %v1220
    %v1223 = vld [vmem:[%s609] sm:$0xff]
    %1225 = vrot.lane.b32.xlu0 %v1222, 64
    %v1226 = vpop.permute.xlu0 %1225
    %v1227 = vsel %vm124, %v1226, 0
    %1229 = vmatpush.msra.mxu0 0.0
    %1230 = vmatpush.msra.mxu0 0.0
    %1231 = vmatpush.msra.mxu0 0.0
    %1232 = vmatpush.msra.mxu0 0.0
    %1233 = vmatpush.msra.mxu0 0.0
    %1234 = vmatpush.msra.mxu0 0.0
    %1235 = vmatpush.msra.mxu0 0.0
    %1236 = vmatpush.msra.mxu0 0.0
    %1237 = vmatpush.msra.mxu0 0.0
    %1238 = vmatpush.msra.mxu0 0.0
    %1239 = vmatpush.msra.mxu0 0.0
    %1240 = vmatpush.msra.mxu0 0.0
    %1241 = vmatpush.msra.mxu0 %v843
    %1242 = vmatpush.msra.mxu0 %v842
    %1243 = vmatpush.msra.mxu0 %v841
    %1244 = vmatpush.msra.mxu0 %v840
    %1245 = vmatmul.f32.gmra.mxu0 %v1227
    %v1246 = vpop.f32.mrf.mxu0
    %v1247 = vadd.f32 0.0, %v1246
    %1248 = vdwg.mxu0
    %v1249 = vadd.f32 %v1223, %v1247
    %v1250 = vxor.u32 %v1249, 2147483648
    %v1251 = vmul.f32 %v1250, 1.442695
    %v1252 = vpow.pop %v1251
    %v1253 = vadd.f32 %v1252, 1.0
    %v1254 = vrcp.pop %v1253
    %v1255 = vmul.f32 %v1253, %v1254
    %v1256 = vsub.f32 1.0, %v1255
    %v1257 = vmul.f32 %v1254, %v1256
    %v1258 = vadd.f32 %v1254, %v1257
    %vm1259 = vweird.f32 %v1253
    %vm1260 = vweird.f32 %v1254
    %vm1261 = vmor %vm1259, %vm1260
    %v1262 = vsel %vm1261, %v1254, %v1258
    %v1263 = vand.u32 2147483647, %v1253
    %vm1264 = vcmp.eq.f32.partialorder %v1263, 8.507059e+37
    %v1265 = vand.u32 %v1253, 2147483648
    %v1266 = vor.u32 1.1754944e-38, %v1265
    %v1267 = vsel %vm1264, %v1266, %v1262
    %v1268 = vmul.f32 1.0, %v1267
    %v1269 = vtanh.pop %v1249
    %v1270 = vmul.f32 %v1268, %v1216
    %1272 = vrot.lane.b32.xlu0 %v1269, 32
    %v1273 = vpop.permute.xlu0 %1272
    %v1275 = vmul.f32 %v1268, %v1273
    %1277 = vrot.lane.b32.xlu0 %v1275, 32
    %v1278 = vpop.permute.xlu0 %1277
    %v1280 = vadd.f32 %v1270, %v1278
    %v1281 = vtanh.pop %v1280
    %1283 = vrot.lane.b32.xlu0 %v1281, 32
    %v1284 = vpop.permute.xlu0 %1283
    %v1286 = vmul.f32 %v1268, %v1284
    %v1287 = vld [vmem:[%s677] sm:$0xff]
    %1289 = vrot.lane.b32.xlu0 %v1286, 64
    %v1290 = vpop.permute.xlu0 %1289
    %v1291 = vsel %vm124, %v1290, 0
    %1293 = vmatpush.msra.mxu0 0.0
    %1294 = vmatpush.msra.mxu0 0.0
    %1295 = vmatpush.msra.mxu0 0.0
    %1296 = vmatpush.msra.mxu0 0.0
    %1297 = vmatpush.msra.mxu0 0.0
    %1298 = vmatpush.msra.mxu0 0.0
    %1299 = vmatpush.msra.mxu0 0.0
    %1300 = vmatpush.msra.mxu0 0.0
    %1301 = vmatpush.msra.mxu0 0.0
    %1302 = vmatpush.msra.mxu0 0.0
    %1303 = vmatpush.msra.mxu0 0.0
    %1304 = vmatpush.msra.mxu0 0.0
    %1305 = vmatpush.msra.mxu0 %v843
    %1306 = vmatpush.msra.mxu0 %v842
    %1307 = vmatpush.msra.mxu0 %v841
    %1308 = vmatpush.msra.mxu0 %v840
    %1309 = vmatmul.f32.gmra.mxu0 %v1291
    %v1310 = vpop.f32.mrf.mxu0
    %v1311 = vadd.f32 0.0, %v1310
    %1312 = vdwg.mxu0
    %v1313 = vadd.f32 %v1287, %v1311
    %v1314 = vxor.u32 %v1313, 2147483648
    %v1315 = vmul.f32 %v1314, 1.442695
    %v1316 = vpow.pop %v1315
    %v1317 = vadd.f32 %v1316, 1.0
    %v1318 = vrcp.pop %v1317
    %v1319 = vmul.f32 %v1317, %v1318
    %v1320 = vsub.f32 1.0, %v1319
    %v1321 = vmul.f32 %v1318, %v1320
    %v1322 = vadd.f32 %v1318, %v1321
    %vm1323 = vweird.f32 %v1317
    %vm1324 = vweird.f32 %v1318
    %vm1325 = vmor %vm1323, %vm1324
    %v1326 = vsel %vm1325, %v1318, %v1322
    %v1327 = vand.u32 2147483647, %v1317
    %vm1328 = vcmp.eq.f32.partialorder %v1327, 8.507059e+37
    %v1329 = vand.u32 %v1317, 2147483648
    %v1330 = vor.u32 1.1754944e-38, %v1329
    %v1331 = vsel %vm1328, %v1330, %v1326
    %v1332 = vmul.f32 1.0, %v1331
    %v1333 = vtanh.pop %v1313
    %v1334 = vmul.f32 %v1332, %v1280
    %1336 = vrot.lane.b32.xlu0 %v1333, 32
    %v1337 = vpop.permute.xlu0 %1336
    %v1339 = vmul.f32 %v1332, %v1337
    %1341 = vrot.lane.b32.xlu0 %v1339, 32
    %v1342 = vpop.permute.xlu0 %1341
    %v1344 = vadd.f32 %v1334, %v1342
    %v1345 = vtanh.pop %v1344
    %1347 = vrot.lane.b32.xlu0 %v1345, 32
    %v1348 = vpop.permute.xlu0 %1347
    %v1350 = vmul.f32 %v1332, %v1348
    %1352 = vrot.lane.b32.xlu0 %v1350, 64
    %v1353 = vpop.permute.xlu0 %1352
    %s1355 = scalar_lea.vmem [#allocation13], 8
    %1356 = vst.msk [vmem:[%s1355] sm:$0xff] %vm124, %v1353
    %1358 = vrot.lane.b32.xlu0 %v1344, 96
    %v1359 = vpop.permute.xlu0 %1358
    %s1361 = scalar_lea.vmem [#allocation14], 8
    %1362 = vst.msk [vmem:[%s1361] sm:$0xff] %vm124, %v1359
    // Predicated region
    $region50: #{tpu_custom_call.1} parent=1 // pred_check
      _
    $region51: #{tpu_custom_call.1} parent=1 // pred_check_branch
      %1364 = sbr.rel (0) target = $region53
    $region52: #{tpu_custom_call.1} parent=1 // pred_region
      %1366 = vsyncadd [#allocation6], 0
      %s1367 = sshll.u32 [#allocation13], 4
      %s1368 = int_to_ptr.vmem [resolvable:$true] %s1367
      %s1369 = sshll.u32 %s7, 4
      %s1370 = int_to_ptr.hbm [resolvable:$true] %s1369
      %1375 = dma.vmem_to_hbm [thread:$0]  %s1368, 256, %s1370, [#allocation6], 128, 128, 8
    $region53: #{tpu_custom_call.1} parent=1 // pred_fallthru
      _
    // Predicated region
    $region54: #{tpu_custom_call.1} parent=1 // pred_check
      _
    $region55: #{tpu_custom_call.1} parent=1 // pred_check_branch
      %1377 = sbr.rel (0) target = $region57
    $region56: #{tpu_custom_call.1} parent=1 // pred_region
      %1379 = vsyncadd [#allocation15], 0
      %s1380 = sshll.u32 [#allocation14], 4
      %s1381 = int_to_ptr.vmem [resolvable:$true] %s1380
      %s1382 = sshll.u32 %s8, 4
      %s1383 = int_to_ptr.hbm [resolvable:$true] %s1382
      %1388 = dma.vmem_to_hbm [thread:$0]  %s1381, 256, %s1383, [#allocation15], 128, 128, 8
    $region57: #{tpu_custom_call.1} parent=1 // pred_fallthru
      _
    // Predicated region
    $region58: #{tpu_custom_call.1} parent=1 // pred_check
      _
    $region59: #{tpu_custom_call.1} parent=1 // pred_check_branch
      %1390 = sbr.rel (0) target = $region61
    $region60: #{tpu_custom_call.1} parent=1 // pred_region
      %1392 = dma.done [#allocation6], 256
    $region61: #{tpu_custom_call.1} parent=1 // pred_fallthru
      _
    // Predicated region
    $region62: #{tpu_custom_call.1} parent=1 // pred_check
      _
    $region63: #{tpu_custom_call.1} parent=1 // pred_check_branch
      %1394 = sbr.rel (0) target = $region65
    $region64: #{tpu_custom_call.1} parent=1 // pred_region
      %1396 = dma.done [#allocation15], 256
    $region65: #{tpu_custom_call.1} parent=1 // pred_fallthru
      _
    %1397 = vsyncpa [#allocation5], 1
    %1398 = vsyncpa [#allocation8], 1
    %1399 = vsyncpa [#allocation11], 1
    %1400 = vsyncpa [#allocation6], 1
    %1401 = vsyncpa [#allocation15], 1

</llo_original>
